<compile_context>
chip_gen: v6e
topology: v6e:2x2x1
jax: 0.10.0
libtpu: 0.0.40
codegen_flags: <defaults>
</compile_context>

<pallas_src>
import math

import jax
import jax.numpy as jnp
from jax import lax
from jax.experimental import pallas as pl
from jax.experimental.pallas import tpu as pltpu  # noqa: F401  (kept for parity; no scratch needed anymore)

# ---------------------------------------------------------------------------
# Model hyper-parameters (small, consistent with a sequence-classification model)
# ---------------------------------------------------------------------------
VOCAB = 64          # vocabulary size
B = 2               # batch
S = 8               # sequence length
H = 32              # hidden size
NUM_HEADS = 2
HEAD_DIM = H // NUM_HEADS
FFN = 4 * H         # 128
NUM_LAYERS = 2
NUM_LABELS = 3
LOGIT_PAD = 128     # lane-dense classifier output width (sliced to NUM_LABELS outside)
LN_EPS = 1e-5


# ---------------------------------------------------------------------------
# Helpers traced inside the Pallas kernel (all f32 VPU/EUP math)
# ---------------------------------------------------------------------------
def _layer_norm(x, gamma, beta):
    mu = jnp.mean(x, axis=-1, keepdims=True)
    var = jnp.mean((x - mu) * (x - mu), axis=-1, keepdims=True)
    inv = lax.rsqrt(var + LN_EPS)
    return (x - mu) * inv * gamma + beta


def _gelu(x):
    # tanh-approximation GELU (EUP-friendly).
    # NOTE: differs slightly from the erf-based GELU of standard BERT checkpoints.
    c = math.sqrt(2.0 / math.pi)
    return 0.5 * x * (1.0 + jnp.tanh(c * (x + 0.044715 * x * x * x)))


# ---------------------------------------------------------------------------
# Single fused Pallas kernel: 2 encoder layers + pooler + classifier, whole batch.
# Activations are (B*S, H) f32; matmul weights are bf16 stacked on a leading L axis.
# ---------------------------------------------------------------------------
def fused_forward_kernel(x_ref, mask_ref,
                         wqkv_ref, bqkv_ref, wo_ref, bo_ref,
                         ln1g_ref, ln1b_ref,
                         w1_ref, b1_ref, w2_ref, b2_ref,
                         ln2g_ref, ln2b_ref,
                         wp_ref, bp_ref, wc_ref, bc_ref,
                         logits_ref):
    x = x_ref[...]                                    # (B*S, H) f32 activations
    scale = 1.0 / math.sqrt(HEAD_DIM)

    # Additive key-mask bias, materialized ONCE and reused across all layers
    # and heads (hoisted; JAX does not CSE broadcast_in_dim).
    # NOTE: fully-masked query rows degrade to uniform attention over padded
    # keys (max-subtract makes all exp terms equal); harmless here because only
    # the [CLS] row of each sequence is kept by the wrapper.
    neg = (1.0 - mask_ref[...]) * (-1e9)              # (B, S)
    mbias = [jnp.broadcast_to(neg[b:b + 1, :], (S, S)) for b in range(B)]

    for l in range(NUM_LAYERS):                       # static unrolled layer loop
        # ---- fused QKV projection for the whole flattened batch:
        #      bf16 operands on the MXU, f32 accumulation + f32 bias.
        qkv = jnp.dot(x.astype(jnp.bfloat16), wqkv_ref[l],
                      preferred_element_type=jnp.float32) + bqkv_ref[l]    # (B*S, 3H) f32
        qkv_bf = qkv.astype(jnp.bfloat16)             # one cast, sliced per head below
        wo_l = wo_ref[l]                              # (H, H) bf16

        # ---- attention: static (batch, head) loops; the output projection is
        #      folded in per head via a sublane-aligned row slice of wo, so no
        #      ctx scratch slab, no masked 16-lane stores, no VMEM readback.
        attn_rows = []
        for b in range(B):
            r0, r1 = b * S, (b + 1) * S
            acc_b = None                              # (S, H) f32 accumulator
            for h in range(NUM_HEADS):
                c0, c1 = h * HEAD_DIM, (h + 1) * HEAD_DIM
                qh = qkv_bf[r0:r1, c0:c1]             # (S, hd) bf16
                kh = qkv_bf[r0:r1, H + c0:H + c1]     # (S, hd) bf16
                vh = qkv_bf[r0:r1, 2 * H + c0:2 * H + c1]
                # scores = q @ k^T expressed as a dot_general contracting the
                # last dim of both operands (no explicit transpose node).
                s = lax.dot_general(qh, kh, (((1,), (1,)), ((), ())),
                                    preferred_element_type=jnp.float32)
                s = s * scale + mbias[b]              # (S, S) f32
                m = jnp.max(s, axis=-1, keepdims=True)
                p = jnp.exp(s - m)
                # NOTE: approx reciprocal -> rows do not sum to exactly 1
                # (fine for classification; EUP slot, nearly free).
                p = p * pl.reciprocal(jnp.sum(p, axis=-1, keepdims=True),
                                      approx=True)
                ctx = jnp.dot(p.astype(jnp.bfloat16), vh,
                              preferred_element_type=jnp.float32)          # (S, hd)
                contrib = jnp.dot(ctx.astype(jnp.bfloat16), wo_l[c0:c1, :],
                                  preferred_element_type=jnp.float32)      # (S, H)
                acc_b = contrib if acc_b is None else acc_b + contrib
            attn_rows.append(acc_b)
        # One cheap sublane-axis concatenate per layer (B blocks of (S, H)).
        attn = jnp.concatenate(attn_rows, axis=0) + bo_ref[l]              # (B*S, H)

        # ---- residual + layernorm (f32)
        y = _layer_norm(x + attn, ln1g_ref[l], ln1b_ref[l])

        # ---- feed-forward + residual + layernorm (bf16 MXU operands, f32 math)
        h1 = _gelu(jnp.dot(y.astype(jnp.bfloat16), w1_ref[l],
                           preferred_element_type=jnp.float32) + b1_ref[l])
        h2 = jnp.dot(h1.astype(jnp.bfloat16), w2_ref[l],
                     preferred_element_type=jnp.float32) + b2_ref[l]
        x = _layer_norm(y + h2, ln2g_ref[l], ln2b_ref[l])

    # ---- pooler + classifier, computed for all B*S rows (compute negligible;
    #      keeps the output store lane/sublane-dense at (B*S, 128)).  The
    #      wrapper keeps only the [CLS] rows and the first NUM_LABELS lanes.
    pooled = jnp.tanh(jnp.dot(x.astype(jnp.bfloat16), wp_ref[...],
                              preferred_element_type=jnp.float32) + bp_ref[...])
    logits = jnp.dot(pooled.astype(jnp.bfloat16), wc_ref[...],
                     preferred_element_type=jnp.float32) + bc_ref[...]
    logits_ref[...] = logits.astype(logits_ref.dtype)


def fused_forward(x_flat, mask_f32, p):
    """x_flat: (B*S, H) f32; mask_f32: (B, S) f32 in {0,1}."""
    # Single gridless pallas_call: at B*S = 16 the kernel is launch/DMA-latency
    # bound, so a grid (or v7x 2-TensorCore sharding via dimension_semantics /
    # core_map) would only add per-step overhead.  If the batch is scaled so
    # B*S >= 256, add a "parallel" grid axis over row blocks and an "arbitrary"
    # axis over layers with per-layer weight BlockSpecs to restore pipelining.
    return pl.pallas_call(
        fused_forward_kernel,
        out_shape=jax.ShapeDtypeStruct((B * S, LOGIT_PAD), jnp.float32),
    )(x_flat, mask_f32,
      p["wqkv"], p["bqkv"], p["wo"], p["bo"],
      p["ln1_g"], p["ln1_b"],
      p["w1"], p["b1"], p["w2"], p["b2"],
      p["ln2_g"], p["ln2_b"],
      p["wp"], p["bp"], p["wc_pad"], p["bc_pad"])


# ---------------------------------------------------------------------------
# Parameter construction (deterministic, in-script; layer params stacked on L axis).
# Matmul weights in bf16 (MXU-native operand dtype); biases/LN params in f32.
# ---------------------------------------------------------------------------
def init_params(key):
    def nrm(k, shape, scale=0.02):
        return scale * jax.random.normal(k, shape, dtype=jnp.float32)

    keys = iter(jax.random.split(key, 16))
    L = NUM_LAYERS
    params = {
        "tok_emb": nrm(next(keys), (VOCAB, H)),
        "pos_emb": nrm(next(keys), (S, H)),
        # encoder layers (stacked): fused QKV weight
        "wqkv": nrm(next(keys), (L, H, 3 * H)).astype(jnp.bfloat16),
        "bqkv": jnp.zeros((L, 1, 3 * H), jnp.float32),
        "wo": nrm(next(keys), (L, H, H)).astype(jnp.bfloat16),
        "bo": jnp.zeros((L, 1, H), jnp.float32),
        "ln1_g": jnp.ones((L, 1, H), jnp.float32),
        "ln1_b": jnp.zeros((L, 1, H), jnp.float32),
        "w1": nrm(next(keys), (L, H, FFN)).astype(jnp.bfloat16),
        "b1": jnp.zeros((L, 1, FFN), jnp.float32),
        "w2": nrm(next(keys), (L, FFN, H)).astype(jnp.bfloat16),
        "b2": jnp.zeros((L, 1, H), jnp.float32),
        "ln2_g": jnp.ones((L, 1, H), jnp.float32),
        "ln2_b": jnp.zeros((L, 1, H), jnp.float32),
        # pooler + classifier (classifier padded to a lane-dense 128-wide output;
        # padded columns are zero and sliced off before the loss)
        "wp": nrm(next(keys), (H, H)).astype(jnp.bfloat16),
        "bp": jnp.zeros((1, H), jnp.float32),
    }
    wc = nrm(next(keys), (H, NUM_LABELS))
    wc_pad = jnp.zeros((H, LOGIT_PAD), jnp.float32).at[:, :NUM_LABELS].set(wc)
    params["wc_pad"] = wc_pad.astype(jnp.bfloat16)
    params["bc_pad"] = jnp.zeros((1, LOGIT_PAD), jnp.float32)
    return params


# ---------------------------------------------------------------------------
# Forward pass: BiasClassifier.forward(input_ids, attention_mask, labels=None)
# ---------------------------------------------------------------------------
def bias_classifier_forward(params, input_ids, attention_mask, labels=None):
    # Embedding lookup + position embedding (tiny gather; plain JAX glue).
    x = params["tok_emb"][input_ids] + params["pos_emb"][None, :, :]     # (B,S,H)
    x_flat = x.reshape(B * S, H).astype(jnp.float32)
    mask_f32 = attention_mask.astype(jnp.float32)                        # (B,S)

    # Single fused Pallas kernel for the whole encoder + head.
    logits_all = fused_forward(x_flat, mask_f32, params)                 # (B*S, 128)

    # Keep [CLS] rows (token 0 of each sequence) and the real label lanes.
    logits = logits_all[0::S, :NUM_LABELS]                               # (B, NUM_LABELS)

    if labels is None:
        return {"logits": logits}

    # Cross-entropy loss (tiny; plain JAX glue).
    lse = jax.nn.logsumexp(logits, axis=-1)
    nll = lse - jnp.take_along_axis(logits, labels[:, None], axis=-1)[:, 0]
    loss = jnp.mean(nll)
    return {"loss": loss, "logits": logits}


# ---------------------------------------------------------------------------
if __name__ == "__main__":
    key = jax.random.PRNGKey(0)
    kp, kid, klab = jax.random.split(key, 3)

    params = init_params(kp)

    input_ids = jax.random.randint(kid, (B, S), 0, VOCAB, dtype=jnp.int32)
    attention_mask = jnp.array(
        [[1, 1, 1, 1, 1, 1, 1, 1],
         [1, 1, 1, 1, 1, 0, 0, 0]], dtype=jnp.int32)                     # 2nd seq padded
    labels = jax.random.randint(klab, (B,), 0, NUM_LABELS, dtype=jnp.int32)

    forward = jax.jit(bias_classifier_forward)
    out = forward(params, input_ids, attention_mask, labels)
    jax.block_until_ready(out["logits"])
    jax.block_until_ready(out["loss"])

    assert out["logits"].shape == (B, NUM_LABELS)
    assert bool(jnp.all(jnp.isfinite(out["logits"])))
    assert jnp.isfinite(out["loss"]).item()
    print("KERNEL_OK")
</pallas_src>

<mosaic_0001>
module attributes {stable_mosaic.version = 11 : i64} {
  func.func @fused_forward_kernel(%arg0: memref<16x32xf32, #tpu.memory_space<vmem>>, %arg1: memref<2x8xf32, #tpu.memory_space<vmem>>, %arg2: memref<2x32x96xbf16, #tpu.memory_space<vmem>>, %arg3: memref<2x1x96xf32, #tpu.memory_space<vmem>>, %arg4: memref<2x32x32xbf16, #tpu.memory_space<vmem>>, %arg5: memref<2x1x32xf32, #tpu.memory_space<vmem>>, %arg6: memref<2x1x32xf32, #tpu.memory_space<vmem>>, %arg7: memref<2x1x32xf32, #tpu.memory_space<vmem>>, %arg8: memref<2x32x128xbf16, #tpu.memory_space<vmem>>, %arg9: memref<2x1x128xf32, #tpu.memory_space<vmem>>, %arg10: memref<2x128x32xbf16, #tpu.memory_space<vmem>>, %arg11: memref<2x1x32xf32, #tpu.memory_space<vmem>>, %arg12: memref<2x1x32xf32, #tpu.memory_space<vmem>>, %arg13: memref<2x1x32xf32, #tpu.memory_space<vmem>>, %arg14: memref<32x32xbf16, #tpu.memory_space<vmem>>, %arg15: memref<1x32xf32, #tpu.memory_space<vmem>>, %arg16: memref<32x128xbf16, #tpu.memory_space<vmem>>, %arg17: memref<1x128xf32, #tpu.memory_space<vmem>>, %arg18: memref<16x128xf32, #tpu.memory_space<vmem>>) attributes {dimension_semantics = [], scalar_prefetch = 0 : i64, scratch_operands = 0 : i64, tpu.core_type = #tpu.core_type<tc>} {
    %c0 = arith.constant 0 : index
    %c0_0 = arith.constant 0 : index
    %0 = vector.load %arg0[%c0, %c0_0] : memref<16x32xf32, #tpu.memory_space<vmem>>, vector<16x32xf32>
    %c0_1 = arith.constant 0 : index
    %c0_2 = arith.constant 0 : index
    %1 = vector.load %arg1[%c0_1, %c0_2] : memref<2x8xf32, #tpu.memory_space<vmem>>, vector<2x8xf32>
    %cst = arith.constant 1.000000e+00 : f32
    %2 = vector.broadcast %cst : f32 to vector<2x8xf32>
    %3 = arith.subf %2, %1 : vector<2x8xf32>
    %cst_3 = arith.constant -1.000000e+09 : f32
    %4 = vector.broadcast %cst_3 : f32 to vector<2x8xf32>
    %5 = arith.mulf %3, %4 : vector<2x8xf32>
    %6 = vector.extract_strided_slice %5 {offsets = [0, 0], sizes = [1, 8], strides = [1, 1]} : vector<2x8xf32> to vector<1x8xf32>
    %7 = vector.shape_cast %6 : vector<1x8xf32> to vector<1x8xf32>
    %8 = vector.broadcast %7 : vector<1x8xf32> to vector<8x8xf32>
    %9 = vector.extract_strided_slice %5 {offsets = [1, 0], sizes = [1, 8], strides = [1, 1]} : vector<2x8xf32> to vector<1x8xf32>
    %10 = vector.shape_cast %9 : vector<1x8xf32> to vector<1x8xf32>
    %11 = vector.broadcast %10 : vector<1x8xf32> to vector<8x8xf32>
    %12 = arith.truncf %0 : vector<16x32xf32> to vector<16x32xbf16>
    %c0_4 = arith.constant 0 : index
    %c0_5 = arith.constant 0 : index
    %c0_6 = arith.constant 0 : index
    %13 = vector.load %arg2[%c0_4, %c0_5, %c0_6] : memref<2x32x96xbf16, #tpu.memory_space<vmem>>, vector<1x32x96xbf16>
    %14 = vector.shape_cast %13 : vector<1x32x96xbf16> to vector<32x96xbf16>
    %cst_7 = arith.constant dense<0.000000e+00> : vector<16x96xf32>
    %15 = tpu.matmul %12, %14, %cst_7 {dimension_numbers = #tpu.dot_dimension_numbers<[1], [0], [0], [1], [0, 0, 1, 1], [], []>} : vector<16x32xbf16>, vector<32x96xbf16>, vector<16x96xf32> -> vector<16x96xf32>
    %c0_8 = arith.constant 0 : index
    %c0_9 = arith.constant 0 : index
    %c0_10 = arith.constant 0 : index
    %16 = vector.load %arg3[%c0_8, %c0_9, %c0_10] : memref<2x1x96xf32, #tpu.memory_space<vmem>>, vector<1x1x96xf32>
    %17 = vector.shape_cast %16 : vector<1x1x96xf32> to vector<1x96xf32>
    %18 = vector.broadcast %17 : vector<1x96xf32> to vector<16x96xf32>
    %19 = arith.addf %15, %18 : vector<16x96xf32>
    %20 = arith.truncf %19 : vector<16x96xf32> to vector<16x96xbf16>
    %c0_11 = arith.constant 0 : index
    %c0_12 = arith.constant 0 : index
    %c0_13 = arith.constant 0 : index
    %21 = vector.load %arg4[%c0_11, %c0_12, %c0_13] : memref<2x32x32xbf16, #tpu.memory_space<vmem>>, vector<1x32x32xbf16>
    %22 = vector.shape_cast %21 : vector<1x32x32xbf16> to vector<32x32xbf16>
    %23 = vector.extract_strided_slice %20 {offsets = [0, 0], sizes = [8, 16], strides = [1, 1]} : vector<16x96xbf16> to vector<8x16xbf16>
    %24 = vector.extract_strided_slice %20 {offsets = [0, 32], sizes = [8, 16], strides = [1, 1]} : vector<16x96xbf16> to vector<8x16xbf16>
    %25 = vector.extract_strided_slice %20 {offsets = [0, 64], sizes = [8, 16], strides = [1, 1]} : vector<16x96xbf16> to vector<8x16xbf16>
    %cst_14 = arith.constant dense<0.000000e+00> : vector<8x8xf32>
    %26 = tpu.matmul %23, %24, %cst_14 {dimension_numbers = #tpu.dot_dimension_numbers<[1], [1], [0], [0], [0, 0, 1, 0], [], []>} : vector<8x16xbf16>, vector<8x16xbf16>, vector<8x8xf32> -> vector<8x8xf32>
    %cst_15 = arith.constant 2.500000e-01 : f32
    %27 = vector.broadcast %cst_15 : f32 to vector<8x8xf32>
    %28 = arith.mulf %26, %27 : vector<8x8xf32>
    %29 = arith.addf %28, %8 : vector<8x8xf32>
    %cst_16 = arith.constant dense<0xFF800000> : vector<8xf32>
    %30 = vector.multi_reduction <maximumf>, %29, %cst_16 [1] : vector<8x8xf32> to vector<8xf32>
    %31 = vector.shape_cast %30 : vector<8xf32> to vector<8x1xf32>
    %32 = vector.broadcast %31 : vector<8x1xf32> to vector<8x8xf32>
    %33 = arith.subf %29, %32 : vector<8x8xf32>
    %34 = math.exp %33 : vector<8x8xf32>
    %cst_17 = arith.constant dense<0.000000e+00> : vector<8xf32>
    %35 = vector.multi_reduction <add>, %34, %cst_17 [1] : vector<8x8xf32> to vector<8xf32>
    %36 = vector.shape_cast %35 : vector<8xf32> to vector<8x1xf32>
    %37 = tpu.reciprocal %36 {approx = true} : vector<8x1xf32> -> vector<8x1xf32>
    %38 = vector.broadcast %37 : vector<8x1xf32> to vector<8x8xf32>
    %39 = arith.mulf %34, %38 : vector<8x8xf32>
    %40 = arith.truncf %39 : vector<8x8xf32> to vector<8x8xbf16>
    %cst_18 = arith.constant dense<0.000000e+00> : vector<8x16xf32>
    %41 = tpu.matmul %40, %25, %cst_18 {dimension_numbers = #tpu.dot_dimension_numbers<[1], [0], [0], [1], [0, 0, 1, 1], [], []>} : vector<8x8xbf16>, vector<8x16xbf16>, vector<8x16xf32> -> vector<8x16xf32>
    %42 = arith.truncf %41 : vector<8x16xf32> to vector<8x16xbf16>
    %43 = vector.extract_strided_slice %22 {offsets = [0, 0], sizes = [16, 32], strides = [1, 1]} : vector<32x32xbf16> to vector<16x32xbf16>
    %cst_19 = arith.constant dense<0.000000e+00> : vector<8x32xf32>
    %44 = tpu.matmul %42, %43, %cst_19 {dimension_numbers = #tpu.dot_dimension_numbers<[1], [0], [0], [1], [0, 0, 1, 1], [], []>} : vector<8x16xbf16>, vector<16x32xbf16>, vector<8x32xf32> -> vector<8x32xf32>
    %45 = vector.extract_strided_slice %20 {offsets = [0, 16], sizes = [8, 16], strides = [1, 1]} : vector<16x96xbf16> to vector<8x16xbf16>
    %46 = vector.extract_strided_slice %20 {offsets = [0, 48], sizes = [8, 16], strides = [1, 1]} : vector<16x96xbf16> to vector<8x16xbf16>
    %47 = vector.extract_strided_slice %20 {offsets = [0, 80], sizes = [8, 16], strides = [1, 1]} : vector<16x96xbf16> to vector<8x16xbf16>
    %cst_20 = arith.constant dense<0.000000e+00> : vector<8x8xf32>
    %48 = tpu.matmul %45, %46, %cst_20 {dimension_numbers = #tpu.dot_dimension_numbers<[1], [1], [0], [0], [0, 0, 1, 0], [], []>} : vector<8x16xbf16>, vector<8x16xbf16>, vector<8x8xf32> -> vector<8x8xf32>
    %cst_21 = arith.constant 2.500000e-01 : f32
    %49 = vector.broadcast %cst_21 : f32 to vector<8x8xf32>
    %50 = arith.mulf %48, %49 : vector<8x8xf32>
    %51 = arith.addf %50, %8 : vector<8x8xf32>
    %cst_22 = arith.constant dense<0xFF800000> : vector<8xf32>
    %52 = vector.multi_reduction <maximumf>, %51, %cst_22 [1] : vector<8x8xf32> to vector<8xf32>
    %53 = vector.shape_cast %52 : vector<8xf32> to vector<8x1xf32>
    %54 = vector.broadcast %53 : vector<8x1xf32> to vector<8x8xf32>
    %55 = arith.subf %51, %54 : vector<8x8xf32>
    %56 = math.exp %55 : vector<8x8xf32>
    %cst_23 = arith.constant dense<0.000000e+00> : vector<8xf32>
    %57 = vector.multi_reduction <add>, %56, %cst_23 [1] : vector<8x8xf32> to vector<8xf32>
    %58 = vector.shape_cast %57 : vector<8xf32> to vector<8x1xf32>
    %59 = tpu.reciprocal %58 {approx = true} : vector<8x1xf32> -> vector<8x1xf32>
    %60 = vector.broadcast %59 : vector<8x1xf32> to vector<8x8xf32>
    %61 = arith.mulf %56, %60 : vector<8x8xf32>
    %62 = arith.truncf %61 : vector<8x8xf32> to vector<8x8xbf16>
    %cst_24 = arith.constant dense<0.000000e+00> : vector<8x16xf32>
    %63 = tpu.matmul %62, %47, %cst_24 {dimension_numbers = #tpu.dot_dimension_numbers<[1], [0], [0], [1], [0, 0, 1, 1], [], []>} : vector<8x8xbf16>, vector<8x16xbf16>, vector<8x16xf32> -> vector<8x16xf32>
    %64 = arith.truncf %63 : vector<8x16xf32> to vector<8x16xbf16>
    %65 = vector.extract_strided_slice %22 {offsets = [16, 0], sizes = [16, 32], strides = [1, 1]} : vector<32x32xbf16> to vector<16x32xbf16>
    %cst_25 = arith.constant dense<0.000000e+00> : vector<8x32xf32>
    %66 = tpu.matmul %64, %65, %cst_25 {dimension_numbers = #tpu.dot_dimension_numbers<[1], [0], [0], [1], [0, 0, 1, 1], [], []>} : vector<8x16xbf16>, vector<16x32xbf16>, vector<8x32xf32> -> vector<8x32xf32>
    %67 = arith.addf %44, %66 : vector<8x32xf32>
    %68 = vector.extract_strided_slice %20 {offsets = [8, 0], sizes = [8, 16], strides = [1, 1]} : vector<16x96xbf16> to vector<8x16xbf16>
    %69 = vector.extract_strided_slice %20 {offsets = [8, 32], sizes = [8, 16], strides = [1, 1]} : vector<16x96xbf16> to vector<8x16xbf16>
    %70 = vector.extract_strided_slice %20 {offsets = [8, 64], sizes = [8, 16], strides = [1, 1]} : vector<16x96xbf16> to vector<8x16xbf16>
    %cst_26 = arith.constant dense<0.000000e+00> : vector<8x8xf32>
    %71 = tpu.matmul %68, %69, %cst_26 {dimension_numbers = #tpu.dot_dimension_numbers<[1], [1], [0], [0], [0, 0, 1, 0], [], []>} : vector<8x16xbf16>, vector<8x16xbf16>, vector<8x8xf32> -> vector<8x8xf32>
    %cst_27 = arith.constant 2.500000e-01 : f32
    %72 = vector.broadcast %cst_27 : f32 to vector<8x8xf32>
    %73 = arith.mulf %71, %72 : vector<8x8xf32>
    %74 = arith.addf %73, %11 : vector<8x8xf32>
    %cst_28 = arith.constant dense<0xFF800000> : vector<8xf32>
    %75 = vector.multi_reduction <maximumf>, %74, %cst_28 [1] : vector<8x8xf32> to vector<8xf32>
    %76 = vector.shape_cast %75 : vector<8xf32> to vector<8x1xf32>
    %77 = vector.broadcast %76 : vector<8x1xf32> to vector<8x8xf32>
    %78 = arith.subf %74, %77 : vector<8x8xf32>
    %79 = math.exp %78 : vector<8x8xf32>
    %cst_29 = arith.constant dense<0.000000e+00> : vector<8xf32>
    %80 = vector.multi_reduction <add>, %79, %cst_29 [1] : vector<8x8xf32> to vector<8xf32>
    %81 = vector.shape_cast %80 : vector<8xf32> to vector<8x1xf32>
    %82 = tpu.reciprocal %81 {approx = true} : vector<8x1xf32> -> vector<8x1xf32>
    %83 = vector.broadcast %82 : vector<8x1xf32> to vector<8x8xf32>
    %84 = arith.mulf %79, %83 : vector<8x8xf32>
    %85 = arith.truncf %84 : vector<8x8xf32> to vector<8x8xbf16>
    %cst_30 = arith.constant dense<0.000000e+00> : vector<8x16xf32>
    %86 = tpu.matmul %85, %70, %cst_30 {dimension_numbers = #tpu.dot_dimension_numbers<[1], [0], [0], [1], [0, 0, 1, 1], [], []>} : vector<8x8xbf16>, vector<8x16xbf16>, vector<8x16xf32> -> vector<8x16xf32>
    %87 = arith.truncf %86 : vector<8x16xf32> to vector<8x16xbf16>
    %88 = vector.extract_strided_slice %22 {offsets = [0, 0], sizes = [16, 32], strides = [1, 1]} : vector<32x32xbf16> to vector<16x32xbf16>
    %cst_31 = arith.constant dense<0.000000e+00> : vector<8x32xf32>
    %89 = tpu.matmul %87, %88, %cst_31 {dimension_numbers = #tpu.dot_dimension_numbers<[1], [0], [0], [1], [0, 0, 1, 1], [], []>} : vector<8x16xbf16>, vector<16x32xbf16>, vector<8x32xf32> -> vector<8x32xf32>
    %90 = vector.extract_strided_slice %20 {offsets = [8, 16], sizes = [8, 16], strides = [1, 1]} : vector<16x96xbf16> to vector<8x16xbf16>
    %91 = vector.extract_strided_slice %20 {offsets = [8, 48], sizes = [8, 16], strides = [1, 1]} : vector<16x96xbf16> to vector<8x16xbf16>
    %92 = vector.extract_strided_slice %20 {offsets = [8, 80], sizes = [8, 16], strides = [1, 1]} : vector<16x96xbf16> to vector<8x16xbf16>
    %cst_32 = arith.constant dense<0.000000e+00> : vector<8x8xf32>
    %93 = tpu.matmul %90, %91, %cst_32 {dimension_numbers = #tpu.dot_dimension_numbers<[1], [1], [0], [0], [0, 0, 1, 0], [], []>} : vector<8x16xbf16>, vector<8x16xbf16>, vector<8x8xf32> -> vector<8x8xf32>
    %cst_33 = arith.constant 2.500000e-01 : f32
    %94 = vector.broadcast %cst_33 : f32 to vector<8x8xf32>
    %95 = arith.mulf %93, %94 : vector<8x8xf32>
    %96 = arith.addf %95, %11 : vector<8x8xf32>
    %cst_34 = arith.constant dense<0xFF800000> : vector<8xf32>
    %97 = vector.multi_reduction <maximumf>, %96, %cst_34 [1] : vector<8x8xf32> to vector<8xf32>
    %98 = vector.shape_cast %97 : vector<8xf32> to vector<8x1xf32>
    %99 = vector.broadcast %98 : vector<8x1xf32> to vector<8x8xf32>
    %100 = arith.subf %96, %99 : vector<8x8xf32>
    %101 = math.exp %100 : vector<8x8xf32>
    %cst_35 = arith.constant dense<0.000000e+00> : vector<8xf32>
    %102 = vector.multi_reduction <add>, %101, %cst_35 [1] : vector<8x8xf32> to vector<8xf32>
    %103 = vector.shape_cast %102 : vector<8xf32> to vector<8x1xf32>
    %104 = tpu.reciprocal %103 {approx = true} : vector<8x1xf32> -> vector<8x1xf32>
    %105 = vector.broadcast %104 : vector<8x1xf32> to vector<8x8xf32>
    %106 = arith.mulf %101, %105 : vector<8x8xf32>
    %107 = arith.truncf %106 : vector<8x8xf32> to vector<8x8xbf16>
    %cst_36 = arith.constant dense<0.000000e+00> : vector<8x16xf32>
    %108 = tpu.matmul %107, %92, %cst_36 {dimension_numbers = #tpu.dot_dimension_numbers<[1], [0], [0], [1], [0, 0, 1, 1], [], []>} : vector<8x8xbf16>, vector<8x16xbf16>, vector<8x16xf32> -> vector<8x16xf32>
    %109 = arith.truncf %108 : vector<8x16xf32> to vector<8x16xbf16>
    %110 = vector.extract_strided_slice %22 {offsets = [16, 0], sizes = [16, 32], strides = [1, 1]} : vector<32x32xbf16> to vector<16x32xbf16>
    %cst_37 = arith.constant dense<0.000000e+00> : vector<8x32xf32>
    %111 = tpu.matmul %109, %110, %cst_37 {dimension_numbers = #tpu.dot_dimension_numbers<[1], [0], [0], [1], [0, 0, 1, 1], [], []>} : vector<8x16xbf16>, vector<16x32xbf16>, vector<8x32xf32> -> vector<8x32xf32>
    %112 = arith.addf %89, %111 : vector<8x32xf32>
    %113 = tpu.concatenate %67, %112 in 0 : vector<8x32xf32>, vector<8x32xf32> -> vector<16x32xf32>
    %c0_38 = arith.constant 0 : index
    %c0_39 = arith.constant 0 : index
    %c0_40 = arith.constant 0 : index
    %114 = vector.load %arg5[%c0_38, %c0_39, %c0_40] : memref<2x1x32xf32, #tpu.memory_space<vmem>>, vector<1x1x32xf32>
    %115 = vector.shape_cast %114 : vector<1x1x32xf32> to vector<1x32xf32>
    %116 = vector.broadcast %115 : vector<1x32xf32> to vector<16x32xf32>
    %117 = arith.addf %113, %116 : vector<16x32xf32>
    %118 = arith.addf %0, %117 : vector<16x32xf32>
    %c0_41 = arith.constant 0 : index
    %c0_42 = arith.constant 0 : index
    %c0_43 = arith.constant 0 : index
    %119 = vector.load %arg6[%c0_41, %c0_42, %c0_43] : memref<2x1x32xf32, #tpu.memory_space<vmem>>, vector<1x1x32xf32>
    %120 = vector.shape_cast %119 : vector<1x1x32xf32> to vector<1x32xf32>
    %c0_44 = arith.constant 0 : index
    %c0_45 = arith.constant 0 : index
    %c0_46 = arith.constant 0 : index
    %121 = vector.load %arg7[%c0_44, %c0_45, %c0_46] : memref<2x1x32xf32, #tpu.memory_space<vmem>>, vector<1x1x32xf32>
    %122 = vector.shape_cast %121 : vector<1x1x32xf32> to vector<1x32xf32>
    %cst_47 = arith.constant dense<0.000000e+00> : vector<16xf32>
    %123 = vector.multi_reduction <add>, %118, %cst_47 [1] : vector<16x32xf32> to vector<16xf32>
    %124 = vector.shape_cast %123 : vector<16xf32> to vector<16x1xf32>
    %cst_48 = arith.constant 3.200000e+01 : f32
    %125 = vector.broadcast %cst_48 : f32 to vector<16x1xf32>
    %126 = arith.divf %124, %125 : vector<16x1xf32>
    %127 = vector.broadcast %126 : vector<16x1xf32> to vector<16x32xf32>
    %128 = arith.subf %118, %127 : vector<16x32xf32>
    %129 = vector.broadcast %126 : vector<16x1xf32> to vector<16x32xf32>
    %130 = arith.subf %118, %129 : vector<16x32xf32>
    %131 = arith.mulf %128, %130 : vector<16x32xf32>
    %cst_49 = arith.constant dense<0.000000e+00> : vector<16xf32>
    %132 = vector.multi_reduction <add>, %131, %cst_49 [1] : vector<16x32xf32> to vector<16xf32>
    %133 = vector.shape_cast %132 : vector<16xf32> to vector<16x1xf32>
    %cst_50 = arith.constant 3.200000e+01 : f32
    %134 = vector.broadcast %cst_50 : f32 to vector<16x1xf32>
    %135 = arith.divf %133, %134 : vector<16x1xf32>
    %cst_51 = arith.constant 9.99999974E-6 : f32
    %136 = vector.broadcast %cst_51 : f32 to vector<16x1xf32>
    %137 = arith.addf %135, %136 : vector<16x1xf32>
    %138 = math.rsqrt %137 : vector<16x1xf32>
    %139 = vector.broadcast %126 : vector<16x1xf32> to vector<16x32xf32>
    %140 = arith.subf %118, %139 : vector<16x32xf32>
    %141 = vector.broadcast %138 : vector<16x1xf32> to vector<16x32xf32>
    %142 = arith.mulf %140, %141 : vector<16x32xf32>
    %143 = vector.broadcast %120 : vector<1x32xf32> to vector<16x32xf32>
    %144 = arith.mulf %142, %143 : vector<16x32xf32>
    %145 = vector.broadcast %122 : vector<1x32xf32> to vector<16x32xf32>
    %146 = arith.addf %144, %145 : vector<16x32xf32>
    %147 = arith.truncf %146 : vector<16x32xf32> to vector<16x32xbf16>
    %c0_52 = arith.constant 0 : index
    %c0_53 = arith.constant 0 : index
    %c0_54 = arith.constant 0 : index
    %148 = vector.load %arg8[%c0_52, %c0_53, %c0_54] : memref<2x32x128xbf16, #tpu.memory_space<vmem>>, vector<1x32x128xbf16>
    %149 = vector.shape_cast %148 : vector<1x32x128xbf16> to vector<32x128xbf16>
    %cst_55 = arith.constant dense<0.000000e+00> : vector<16x128xf32>
    %150 = tpu.matmul %147, %149, %cst_55 {dimension_numbers = #tpu.dot_dimension_numbers<[1], [0], [0], [1], [0, 0, 1, 1], [], []>} : vector<16x32xbf16>, vector<32x128xbf16>, vector<16x128xf32> -> vector<16x128xf32>
    %c0_56 = arith.constant 0 : index
    %c0_57 = arith.constant 0 : index
    %c0_58 = arith.constant 0 : index
    %151 = vector.load %arg9[%c0_56, %c0_57, %c0_58] : memref<2x1x128xf32, #tpu.memory_space<vmem>>, vector<1x1x128xf32>
    %152 = vector.shape_cast %151 : vector<1x1x128xf32> to vector<1x128xf32>
    %153 = vector.broadcast %152 : vector<1x128xf32> to vector<16x128xf32>
    %154 = arith.addf %150, %153 : vector<16x128xf32>
    %cst_59 = arith.constant 5.000000e-01 : f32
    %155 = vector.broadcast %cst_59 : f32 to vector<16x128xf32>
    %156 = arith.mulf %155, %154 : vector<16x128xf32>
    %cst_60 = arith.constant 4.471500e-02 : f32
    %157 = vector.broadcast %cst_60 : f32 to vector<16x128xf32>
    %158 = arith.mulf %157, %154 : vector<16x128xf32>
    %159 = arith.mulf %158, %154 : vector<16x128xf32>
    %160 = arith.mulf %159, %154 : vector<16x128xf32>
    %161 = arith.addf %154, %160 : vector<16x128xf32>
    %cst_61 = arith.constant 0.797884583 : f32
    %162 = vector.broadcast %cst_61 : f32 to vector<16x128xf32>
    %163 = arith.mulf %162, %161 : vector<16x128xf32>
    %164 = math.tanh %163 : vector<16x128xf32>
    %cst_62 = arith.constant 1.000000e+00 : f32
    %165 = vector.broadcast %cst_62 : f32 to vector<16x128xf32>
    %166 = arith.addf %165, %164 : vector<16x128xf32>
    %167 = arith.mulf %156, %166 : vector<16x128xf32>
    %168 = arith.truncf %167 : vector<16x128xf32> to vector<16x128xbf16>
    %c0_63 = arith.constant 0 : index
    %c0_64 = arith.constant 0 : index
    %c0_65 = arith.constant 0 : index
    %169 = vector.load %arg10[%c0_63, %c0_64, %c0_65] : memref<2x128x32xbf16, #tpu.memory_space<vmem>>, vector<1x128x32xbf16>
    %170 = vector.shape_cast %169 : vector<1x128x32xbf16> to vector<128x32xbf16>
    %cst_66 = arith.constant dense<0.000000e+00> : vector<16x32xf32>
    %171 = tpu.matmul %168, %170, %cst_66 {dimension_numbers = #tpu.dot_dimension_numbers<[1], [0], [0], [1], [0, 0, 1, 1], [], []>} : vector<16x128xbf16>, vector<128x32xbf16>, vector<16x32xf32> -> vector<16x32xf32>
    %c0_67 = arith.constant 0 : index
    %c0_68 = arith.constant 0 : index
    %c0_69 = arith.constant 0 : index
    %172 = vector.load %arg11[%c0_67, %c0_68, %c0_69] : memref<2x1x32xf32, #tpu.memory_space<vmem>>, vector<1x1x32xf32>
    %173 = vector.shape_cast %172 : vector<1x1x32xf32> to vector<1x32xf32>
    %174 = vector.broadcast %173 : vector<1x32xf32> to vector<16x32xf32>
    %175 = arith.addf %171, %174 : vector<16x32xf32>
    %176 = arith.addf %146, %175 : vector<16x32xf32>
    %c0_70 = arith.constant 0 : index
    %c0_71 = arith.constant 0 : index
    %c0_72 = arith.constant 0 : index
    %177 = vector.load %arg12[%c0_70, %c0_71, %c0_72] : memref<2x1x32xf32, #tpu.memory_space<vmem>>, vector<1x1x32xf32>
    %178 = vector.shape_cast %177 : vector<1x1x32xf32> to vector<1x32xf32>
    %c0_73 = arith.constant 0 : index
    %c0_74 = arith.constant 0 : index
    %c0_75 = arith.constant 0 : index
    %179 = vector.load %arg13[%c0_73, %c0_74, %c0_75] : memref<2x1x32xf32, #tpu.memory_space<vmem>>, vector<1x1x32xf32>
    %180 = vector.shape_cast %179 : vector<1x1x32xf32> to vector<1x32xf32>
    %cst_76 = arith.constant dense<0.000000e+00> : vector<16xf32>
    %181 = vector.multi_reduction <add>, %176, %cst_76 [1] : vector<16x32xf32> to vector<16xf32>
    %182 = vector.shape_cast %181 : vector<16xf32> to vector<16x1xf32>
    %cst_77 = arith.constant 3.200000e+01 : f32
    %183 = vector.broadcast %cst_77 : f32 to vector<16x1xf32>
    %184 = arith.divf %182, %183 : vector<16x1xf32>
    %185 = vector.broadcast %184 : vector<16x1xf32> to vector<16x32xf32>
    %186 = arith.subf %176, %185 : vector<16x32xf32>
    %187 = vector.broadcast %184 : vector<16x1xf32> to vector<16x32xf32>
    %188 = arith.subf %176, %187 : vector<16x32xf32>
    %189 = arith.mulf %186, %188 : vector<16x32xf32>
    %cst_78 = arith.constant dense<0.000000e+00> : vector<16xf32>
    %190 = vector.multi_reduction <add>, %189, %cst_78 [1] : vector<16x32xf32> to vector<16xf32>
    %191 = vector.shape_cast %190 : vector<16xf32> to vector<16x1xf32>
    %cst_79 = arith.constant 3.200000e+01 : f32
    %192 = vector.broadcast %cst_79 : f32 to vector<16x1xf32>
    %193 = arith.divf %191, %192 : vector<16x1xf32>
    %cst_80 = arith.constant 9.99999974E-6 : f32
    %194 = vector.broadcast %cst_80 : f32 to vector<16x1xf32>
    %195 = arith.addf %193, %194 : vector<16x1xf32>
    %196 = math.rsqrt %195 : vector<16x1xf32>
    %197 = vector.broadcast %184 : vector<16x1xf32> to vector<16x32xf32>
    %198 = arith.subf %176, %197 : vector<16x32xf32>
    %199 = vector.broadcast %196 : vector<16x1xf32> to vector<16x32xf32>
    %200 = arith.mulf %198, %199 : vector<16x32xf32>
    %201 = vector.broadcast %178 : vector<1x32xf32> to vector<16x32xf32>
    %202 = arith.mulf %200, %201 : vector<16x32xf32>
    %203 = vector.broadcast %180 : vector<1x32xf32> to vector<16x32xf32>
    %204 = arith.addf %202, %203 : vector<16x32xf32>
    %205 = arith.truncf %204 : vector<16x32xf32> to vector<16x32xbf16>
    %c1 = arith.constant 1 : index
    %c0_81 = arith.constant 0 : index
    %c0_82 = arith.constant 0 : index
    %206 = vector.load %arg2[%c1, %c0_81, %c0_82] : memref<2x32x96xbf16, #tpu.memory_space<vmem>>, vector<1x32x96xbf16>
    %207 = vector.shape_cast %206 : vector<1x32x96xbf16> to vector<32x96xbf16>
    %cst_83 = arith.constant dense<0.000000e+00> : vector<16x96xf32>
    %208 = tpu.matmul %205, %207, %cst_83 {dimension_numbers = #tpu.dot_dimension_numbers<[1], [0], [0], [1], [0, 0, 1, 1], [], []>} : vector<16x32xbf16>, vector<32x96xbf16>, vector<16x96xf32> -> vector<16x96xf32>
    %c1_84 = arith.constant 1 : index
    %c0_85 = arith.constant 0 : index
    %c0_86 = arith.constant 0 : index
    %209 = vector.load %arg3[%c1_84, %c0_85, %c0_86] : memref<2x1x96xf32, #tpu.memory_space<vmem>>, vector<1x1x96xf32>
    %210 = vector.shape_cast %209 : vector<1x1x96xf32> to vector<1x96xf32>
    %211 = vector.broadcast %210 : vector<1x96xf32> to vector<16x96xf32>
    %212 = arith.addf %208, %211 : vector<16x96xf32>
    %213 = arith.truncf %212 : vector<16x96xf32> to vector<16x96xbf16>
    %c1_87 = arith.constant 1 : index
    %c0_88 = arith.constant 0 : index
    %c0_89 = arith.constant 0 : index
    %214 = vector.load %arg4[%c1_87, %c0_88, %c0_89] : memref<2x32x32xbf16, #tpu.memory_space<vmem>>, vector<1x32x32xbf16>
    %215 = vector.shape_cast %214 : vector<1x32x32xbf16> to vector<32x32xbf16>
    %216 = vector.extract_strided_slice %213 {offsets = [0, 0], sizes = [8, 16], strides = [1, 1]} : vector<16x96xbf16> to vector<8x16xbf16>
    %217 = vector.extract_strided_slice %213 {offsets = [0, 32], sizes = [8, 16], strides = [1, 1]} : vector<16x96xbf16> to vector<8x16xbf16>
    %218 = vector.extract_strided_slice %213 {offsets = [0, 64], sizes = [8, 16], strides = [1, 1]} : vector<16x96xbf16> to vector<8x16xbf16>
    %cst_90 = arith.constant dense<0.000000e+00> : vector<8x8xf32>
    %219 = tpu.matmul %216, %217, %cst_90 {dimension_numbers = #tpu.dot_dimension_numbers<[1], [1], [0], [0], [0, 0, 1, 0], [], []>} : vector<8x16xbf16>, vector<8x16xbf16>, vector<8x8xf32> -> vector<8x8xf32>
    %cst_91 = arith.constant 2.500000e-01 : f32
    %220 = vector.broadcast %cst_91 : f32 to vector<8x8xf32>
    %221 = arith.mulf %219, %220 : vector<8x8xf32>
    %222 = arith.addf %221, %8 : vector<8x8xf32>
    %cst_92 = arith.constant dense<0xFF800000> : vector<8xf32>
    %223 = vector.multi_reduction <maximumf>, %222, %cst_92 [1] : vector<8x8xf32> to vector<8xf32>
    %224 = vector.shape_cast %223 : vector<8xf32> to vector<8x1xf32>
    %225 = vector.broadcast %224 : vector<8x1xf32> to vector<8x8xf32>
    %226 = arith.subf %222, %225 : vector<8x8xf32>
    %227 = math.exp %226 : vector<8x8xf32>
    %cst_93 = arith.constant dense<0.000000e+00> : vector<8xf32>
    %228 = vector.multi_reduction <add>, %227, %cst_93 [1] : vector<8x8xf32> to vector<8xf32>
    %229 = vector.shape_cast %228 : vector<8xf32> to vector<8x1xf32>
    %230 = tpu.reciprocal %229 {approx = true} : vector<8x1xf32> -> vector<8x1xf32>
    %231 = vector.broadcast %230 : vector<8x1xf32> to vector<8x8xf32>
    %232 = arith.mulf %227, %231 : vector<8x8xf32>
    %233 = arith.truncf %232 : vector<8x8xf32> to vector<8x8xbf16>
    %cst_94 = arith.constant dense<0.000000e+00> : vector<8x16xf32>
    %234 = tpu.matmul %233, %218, %cst_94 {dimension_numbers = #tpu.dot_dimension_numbers<[1], [0], [0], [1], [0, 0, 1, 1], [], []>} : vector<8x8xbf16>, vector<8x16xbf16>, vector<8x16xf32> -> vector<8x16xf32>
    %235 = arith.truncf %234 : vector<8x16xf32> to vector<8x16xbf16>
    %236 = vector.extract_strided_slice %215 {offsets = [0, 0], sizes = [16, 32], strides = [1, 1]} : vector<32x32xbf16> to vector<16x32xbf16>
    %cst_95 = arith.constant dense<0.000000e+00> : vector<8x32xf32>
    %237 = tpu.matmul %235, %236, %cst_95 {dimension_numbers = #tpu.dot_dimension_numbers<[1], [0], [0], [1], [0, 0, 1, 1], [], []>} : vector<8x16xbf16>, vector<16x32xbf16>, vector<8x32xf32> -> vector<8x32xf32>
    %238 = vector.extract_strided_slice %213 {offsets = [0, 16], sizes = [8, 16], strides = [1, 1]} : vector<16x96xbf16> to vector<8x16xbf16>
    %239 = vector.extract_strided_slice %213 {offsets = [0, 48], sizes = [8, 16], strides = [1, 1]} : vector<16x96xbf16> to vector<8x16xbf16>
    %240 = vector.extract_strided_slice %213 {offsets = [0, 80], sizes = [8, 16], strides = [1, 1]} : vector<16x96xbf16> to vector<8x16xbf16>
    %cst_96 = arith.constant dense<0.000000e+00> : vector<8x8xf32>
    %241 = tpu.matmul %238, %239, %cst_96 {dimension_numbers = #tpu.dot_dimension_numbers<[1], [1], [0], [0], [0, 0, 1, 0], [], []>} : vector<8x16xbf16>, vector<8x16xbf16>, vector<8x8xf32> -> vector<8x8xf32>
    %cst_97 = arith.constant 2.500000e-01 : f32
    %242 = vector.broadcast %cst_97 : f32 to vector<8x8xf32>
    %243 = arith.mulf %241, %242 : vector<8x8xf32>
    %244 = arith.addf %243, %8 : vector<8x8xf32>
    %cst_98 = arith.constant dense<0xFF800000> : vector<8xf32>
    %245 = vector.multi_reduction <maximumf>, %244, %cst_98 [1] : vector<8x8xf32> to vector<8xf32>
    %246 = vector.shape_cast %245 : vector<8xf32> to vector<8x1xf32>
    %247 = vector.broadcast %246 : vector<8x1xf32> to vector<8x8xf32>
    %248 = arith.subf %244, %247 : vector<8x8xf32>
    %249 = math.exp %248 : vector<8x8xf32>
    %cst_99 = arith.constant dense<0.000000e+00> : vector<8xf32>
    %250 = vector.multi_reduction <add>, %249, %cst_99 [1] : vector<8x8xf32> to vector<8xf32>
    %251 = vector.shape_cast %250 : vector<8xf32> to vector<8x1xf32>
    %252 = tpu.reciprocal %251 {approx = true} : vector<8x1xf32> -> vector<8x1xf32>
    %253 = vector.broadcast %252 : vector<8x1xf32> to vector<8x8xf32>
    %254 = arith.mulf %249, %253 : vector<8x8xf32>
    %255 = arith.truncf %254 : vector<8x8xf32> to vector<8x8xbf16>
    %cst_100 = arith.constant dense<0.000000e+00> : vector<8x16xf32>
    %256 = tpu.matmul %255, %240, %cst_100 {dimension_numbers = #tpu.dot_dimension_numbers<[1], [0], [0], [1], [0, 0, 1, 1], [], []>} : vector<8x8xbf16>, vector<8x16xbf16>, vector<8x16xf32> -> vector<8x16xf32>
    %257 = arith.truncf %256 : vector<8x16xf32> to vector<8x16xbf16>
    %258 = vector.extract_strided_slice %215 {offsets = [16, 0], sizes = [16, 32], strides = [1, 1]} : vector<32x32xbf16> to vector<16x32xbf16>
    %cst_101 = arith.constant dense<0.000000e+00> : vector<8x32xf32>
    %259 = tpu.matmul %257, %258, %cst_101 {dimension_numbers = #tpu.dot_dimension_numbers<[1], [0], [0], [1], [0, 0, 1, 1], [], []>} : vector<8x16xbf16>, vector<16x32xbf16>, vector<8x32xf32> -> vector<8x32xf32>
    %260 = arith.addf %237, %259 : vector<8x32xf32>
    %261 = vector.extract_strided_slice %213 {offsets = [8, 0], sizes = [8, 16], strides = [1, 1]} : vector<16x96xbf16> to vector<8x16xbf16>
    %262 = vector.extract_strided_slice %213 {offsets = [8, 32], sizes = [8, 16], strides = [1, 1]} : vector<16x96xbf16> to vector<8x16xbf16>
    %263 = vector.extract_strided_slice %213 {offsets = [8, 64], sizes = [8, 16], strides = [1, 1]} : vector<16x96xbf16> to vector<8x16xbf16>
    %cst_102 = arith.constant dense<0.000000e+00> : vector<8x8xf32>
    %264 = tpu.matmul %261, %262, %cst_102 {dimension_numbers = #tpu.dot_dimension_numbers<[1], [1], [0], [0], [0, 0, 1, 0], [], []>} : vector<8x16xbf16>, vector<8x16xbf16>, vector<8x8xf32> -> vector<8x8xf32>
    %cst_103 = arith.constant 2.500000e-01 : f32
    %265 = vector.broadcast %cst_103 : f32 to vector<8x8xf32>
    %266 = arith.mulf %264, %265 : vector<8x8xf32>
    %267 = arith.addf %266, %11 : vector<8x8xf32>
    %cst_104 = arith.constant dense<0xFF800000> : vector<8xf32>
    %268 = vector.multi_reduction <maximumf>, %267, %cst_104 [1] : vector<8x8xf32> to vector<8xf32>
    %269 = vector.shape_cast %268 : vector<8xf32> to vector<8x1xf32>
    %270 = vector.broadcast %269 : vector<8x1xf32> to vector<8x8xf32>
    %271 = arith.subf %267, %270 : vector<8x8xf32>
    %272 = math.exp %271 : vector<8x8xf32>
    %cst_105 = arith.constant dense<0.000000e+00> : vector<8xf32>
    %273 = vector.multi_reduction <add>, %272, %cst_105 [1] : vector<8x8xf32> to vector<8xf32>
    %274 = vector.shape_cast %273 : vector<8xf32> to vector<8x1xf32>
    %275 = tpu.reciprocal %274 {approx = true} : vector<8x1xf32> -> vector<8x1xf32>
    %276 = vector.broadcast %275 : vector<8x1xf32> to vector<8x8xf32>
    %277 = arith.mulf %272, %276 : vector<8x8xf32>
    %278 = arith.truncf %277 : vector<8x8xf32> to vector<8x8xbf16>
    %cst_106 = arith.constant dense<0.000000e+00> : vector<8x16xf32>
    %279 = tpu.matmul %278, %263, %cst_106 {dimension_numbers = #tpu.dot_dimension_numbers<[1], [0], [0], [1], [0, 0, 1, 1], [], []>} : vector<8x8xbf16>, vector<8x16xbf16>, vector<8x16xf32> -> vector<8x16xf32>
    %280 = arith.truncf %279 : vector<8x16xf32> to vector<8x16xbf16>
    %281 = vector.extract_strided_slice %215 {offsets = [0, 0], sizes = [16, 32], strides = [1, 1]} : vector<32x32xbf16> to vector<16x32xbf16>
    %cst_107 = arith.constant dense<0.000000e+00> : vector<8x32xf32>
    %282 = tpu.matmul %280, %281, %cst_107 {dimension_numbers = #tpu.dot_dimension_numbers<[1], [0], [0], [1], [0, 0, 1, 1], [], []>} : vector<8x16xbf16>, vector<16x32xbf16>, vector<8x32xf32> -> vector<8x32xf32>
    %283 = vector.extract_strided_slice %213 {offsets = [8, 16], sizes = [8, 16], strides = [1, 1]} : vector<16x96xbf16> to vector<8x16xbf16>
    %284 = vector.extract_strided_slice %213 {offsets = [8, 48], sizes = [8, 16], strides = [1, 1]} : vector<16x96xbf16> to vector<8x16xbf16>
    %285 = vector.extract_strided_slice %213 {offsets = [8, 80], sizes = [8, 16], strides = [1, 1]} : vector<16x96xbf16> to vector<8x16xbf16>
    %cst_108 = arith.constant dense<0.000000e+00> : vector<8x8xf32>
    %286 = tpu.matmul %283, %284, %cst_108 {dimension_numbers = #tpu.dot_dimension_numbers<[1], [1], [0], [0], [0, 0, 1, 0], [], []>} : vector<8x16xbf16>, vector<8x16xbf16>, vector<8x8xf32> -> vector<8x8xf32>
    %cst_109 = arith.constant 2.500000e-01 : f32
    %287 = vector.broadcast %cst_109 : f32 to vector<8x8xf32>
    %288 = arith.mulf %286, %287 : vector<8x8xf32>
    %289 = arith.addf %288, %11 : vector<8x8xf32>
    %cst_110 = arith.constant dense<0xFF800000> : vector<8xf32>
    %290 = vector.multi_reduction <maximumf>, %289, %cst_110 [1] : vector<8x8xf32> to vector<8xf32>
    %291 = vector.shape_cast %290 : vector<8xf32> to vector<8x1xf32>
    %292 = vector.broadcast %291 : vector<8x1xf32> to vector<8x8xf32>
    %293 = arith.subf %289, %292 : vector<8x8xf32>
    %294 = math.exp %293 : vector<8x8xf32>
    %cst_111 = arith.constant dense<0.000000e+00> : vector<8xf32>
    %295 = vector.multi_reduction <add>, %294, %cst_111 [1] : vector<8x8xf32> to vector<8xf32>
    %296 = vector.shape_cast %295 : vector<8xf32> to vector<8x1xf32>
    %297 = tpu.reciprocal %296 {approx = true} : vector<8x1xf32> -> vector<8x1xf32>
    %298 = vector.broadcast %297 : vector<8x1xf32> to vector<8x8xf32>
    %299 = arith.mulf %294, %298 : vector<8x8xf32>
    %300 = arith.truncf %299 : vector<8x8xf32> to vector<8x8xbf16>
    %cst_112 = arith.constant dense<0.000000e+00> : vector<8x16xf32>
    %301 = tpu.matmul %300, %285, %cst_112 {dimension_numbers = #tpu.dot_dimension_numbers<[1], [0], [0], [1], [0, 0, 1, 1], [], []>} : vector<8x8xbf16>, vector<8x16xbf16>, vector<8x16xf32> -> vector<8x16xf32>
    %302 = arith.truncf %301 : vector<8x16xf32> to vector<8x16xbf16>
    %303 = vector.extract_strided_slice %215 {offsets = [16, 0], sizes = [16, 32], strides = [1, 1]} : vector<32x32xbf16> to vector<16x32xbf16>
    %cst_113 = arith.constant dense<0.000000e+00> : vector<8x32xf32>
    %304 = tpu.matmul %302, %303, %cst_113 {dimension_numbers = #tpu.dot_dimension_numbers<[1], [0], [0], [1], [0, 0, 1, 1], [], []>} : vector<8x16xbf16>, vector<16x32xbf16>, vector<8x32xf32> -> vector<8x32xf32>
    %305 = arith.addf %282, %304 : vector<8x32xf32>
    %306 = tpu.concatenate %260, %305 in 0 : vector<8x32xf32>, vector<8x32xf32> -> vector<16x32xf32>
    %c1_114 = arith.constant 1 : index
    %c0_115 = arith.constant 0 : index
    %c0_116 = arith.constant 0 : index
    %307 = vector.load %arg5[%c1_114, %c0_115, %c0_116] : memref<2x1x32xf32, #tpu.memory_space<vmem>>, vector<1x1x32xf32>
    %308 = vector.shape_cast %307 : vector<1x1x32xf32> to vector<1x32xf32>
    %309 = vector.broadcast %308 : vector<1x32xf32> to vector<16x32xf32>
    %310 = arith.addf %306, %309 : vector<16x32xf32>
    %311 = arith.addf %204, %310 : vector<16x32xf32>
    %c1_117 = arith.constant 1 : index
    %c0_118 = arith.constant 0 : index
    %c0_119 = arith.constant 0 : index
    %312 = vector.load %arg6[%c1_117, %c0_118, %c0_119] : memref<2x1x32xf32, #tpu.memory_space<vmem>>, vector<1x1x32xf32>
    %313 = vector.shape_cast %312 : vector<1x1x32xf32> to vector<1x32xf32>
    %c1_120 = arith.constant 1 : index
    %c0_121 = arith.constant 0 : index
    %c0_122 = arith.constant 0 : index
    %314 = vector.load %arg7[%c1_120, %c0_121, %c0_122] : memref<2x1x32xf32, #tpu.memory_space<vmem>>, vector<1x1x32xf32>
    %315 = vector.shape_cast %314 : vector<1x1x32xf32> to vector<1x32xf32>
    %cst_123 = arith.constant dense<0.000000e+00> : vector<16xf32>
    %316 = vector.multi_reduction <add>, %311, %cst_123 [1] : vector<16x32xf32> to vector<16xf32>
    %317 = vector.shape_cast %316 : vector<16xf32> to vector<16x1xf32>
    %cst_124 = arith.constant 3.200000e+01 : f32
    %318 = vector.broadcast %cst_124 : f32 to vector<16x1xf32>
    %319 = arith.divf %317, %318 : vector<16x1xf32>
    %320 = vector.broadcast %319 : vector<16x1xf32> to vector<16x32xf32>
    %321 = arith.subf %311, %320 : vector<16x32xf32>
    %322 = vector.broadcast %319 : vector<16x1xf32> to vector<16x32xf32>
    %323 = arith.subf %311, %322 : vector<16x32xf32>
    %324 = arith.mulf %321, %323 : vector<16x32xf32>
    %cst_125 = arith.constant dense<0.000000e+00> : vector<16xf32>
    %325 = vector.multi_reduction <add>, %324, %cst_125 [1] : vector<16x32xf32> to vector<16xf32>
    %326 = vector.shape_cast %325 : vector<16xf32> to vector<16x1xf32>
    %cst_126 = arith.constant 3.200000e+01 : f32
    %327 = vector.broadcast %cst_126 : f32 to vector<16x1xf32>
    %328 = arith.divf %326, %327 : vector<16x1xf32>
    %cst_127 = arith.constant 9.99999974E-6 : f32
    %329 = vector.broadcast %cst_127 : f32 to vector<16x1xf32>
    %330 = arith.addf %328, %329 : vector<16x1xf32>
    %331 = math.rsqrt %330 : vector<16x1xf32>
    %332 = vector.broadcast %319 : vector<16x1xf32> to vector<16x32xf32>
    %333 = arith.subf %311, %332 : vector<16x32xf32>
    %334 = vector.broadcast %331 : vector<16x1xf32> to vector<16x32xf32>
    %335 = arith.mulf %333, %334 : vector<16x32xf32>
    %336 = vector.broadcast %313 : vector<1x32xf32> to vector<16x32xf32>
    %337 = arith.mulf %335, %336 : vector<16x32xf32>
    %338 = vector.broadcast %315 : vector<1x32xf32> to vector<16x32xf32>
    %339 = arith.addf %337, %338 : vector<16x32xf32>
    %340 = arith.truncf %339 : vector<16x32xf32> to vector<16x32xbf16>
    %c1_128 = arith.constant 1 : index
    %c0_129 = arith.constant 0 : index
    %c0_130 = arith.constant 0 : index
    %341 = vector.load %arg8[%c1_128, %c0_129, %c0_130] : memref<2x32x128xbf16, #tpu.memory_space<vmem>>, vector<1x32x128xbf16>
    %342 = vector.shape_cast %341 : vector<1x32x128xbf16> to vector<32x128xbf16>
    %cst_131 = arith.constant dense<0.000000e+00> : vector<16x128xf32>
    %343 = tpu.matmul %340, %342, %cst_131 {dimension_numbers = #tpu.dot_dimension_numbers<[1], [0], [0], [1], [0, 0, 1, 1], [], []>} : vector<16x32xbf16>, vector<32x128xbf16>, vector<16x128xf32> -> vector<16x128xf32>
    %c1_132 = arith.constant 1 : index
    %c0_133 = arith.constant 0 : index
    %c0_134 = arith.constant 0 : index
    %344 = vector.load %arg9[%c1_132, %c0_133, %c0_134] : memref<2x1x128xf32, #tpu.memory_space<vmem>>, vector<1x1x128xf32>
    %345 = vector.shape_cast %344 : vector<1x1x128xf32> to vector<1x128xf32>
    %346 = vector.broadcast %345 : vector<1x128xf32> to vector<16x128xf32>
    %347 = arith.addf %343, %346 : vector<16x128xf32>
    %cst_135 = arith.constant 5.000000e-01 : f32
    %348 = vector.broadcast %cst_135 : f32 to vector<16x128xf32>
    %349 = arith.mulf %348, %347 : vector<16x128xf32>
    %cst_136 = arith.constant 4.471500e-02 : f32
    %350 = vector.broadcast %cst_136 : f32 to vector<16x128xf32>
    %351 = arith.mulf %350, %347 : vector<16x128xf32>
    %352 = arith.mulf %351, %347 : vector<16x128xf32>
    %353 = arith.mulf %352, %347 : vector<16x128xf32>
    %354 = arith.addf %347, %353 : vector<16x128xf32>
    %cst_137 = arith.constant 0.797884583 : f32
    %355 = vector.broadcast %cst_137 : f32 to vector<16x128xf32>
    %356 = arith.mulf %355, %354 : vector<16x128xf32>
    %357 = math.tanh %356 : vector<16x128xf32>
    %cst_138 = arith.constant 1.000000e+00 : f32
    %358 = vector.broadcast %cst_138 : f32 to vector<16x128xf32>
    %359 = arith.addf %358, %357 : vector<16x128xf32>
    %360 = arith.mulf %349, %359 : vector<16x128xf32>
    %361 = arith.truncf %360 : vector<16x128xf32> to vector<16x128xbf16>
    %c1_139 = arith.constant 1 : index
    %c0_140 = arith.constant 0 : index
    %c0_141 = arith.constant 0 : index
    %362 = vector.load %arg10[%c1_139, %c0_140, %c0_141] : memref<2x128x32xbf16, #tpu.memory_space<vmem>>, vector<1x128x32xbf16>
    %363 = vector.shape_cast %362 : vector<1x128x32xbf16> to vector<128x32xbf16>
    %cst_142 = arith.constant dense<0.000000e+00> : vector<16x32xf32>
    %364 = tpu.matmul %361, %363, %cst_142 {dimension_numbers = #tpu.dot_dimension_numbers<[1], [0], [0], [1], [0, 0, 1, 1], [], []>} : vector<16x128xbf16>, vector<128x32xbf16>, vector<16x32xf32> -> vector<16x32xf32>
    %c1_143 = arith.constant 1 : index
    %c0_144 = arith.constant 0 : index
    %c0_145 = arith.constant 0 : index
    %365 = vector.load %arg11[%c1_143, %c0_144, %c0_145] : memref<2x1x32xf32, #tpu.memory_space<vmem>>, vector<1x1x32xf32>
    %366 = vector.shape_cast %365 : vector<1x1x32xf32> to vector<1x32xf32>
    %367 = vector.broadcast %366 : vector<1x32xf32> to vector<16x32xf32>
    %368 = arith.addf %364, %367 : vector<16x32xf32>
    %369 = arith.addf %339, %368 : vector<16x32xf32>
    %c1_146 = arith.constant 1 : index
    %c0_147 = arith.constant 0 : index
    %c0_148 = arith.constant 0 : index
    %370 = vector.load %arg12[%c1_146, %c0_147, %c0_148] : memref<2x1x32xf32, #tpu.memory_space<vmem>>, vector<1x1x32xf32>
    %371 = vector.shape_cast %370 : vector<1x1x32xf32> to vector<1x32xf32>
    %c1_149 = arith.constant 1 : index
    %c0_150 = arith.constant 0 : index
    %c0_151 = arith.constant 0 : index
    %372 = vector.load %arg13[%c1_149, %c0_150, %c0_151] : memref<2x1x32xf32, #tpu.memory_space<vmem>>, vector<1x1x32xf32>
    %373 = vector.shape_cast %372 : vector<1x1x32xf32> to vector<1x32xf32>
    %cst_152 = arith.constant dense<0.000000e+00> : vector<16xf32>
    %374 = vector.multi_reduction <add>, %369, %cst_152 [1] : vector<16x32xf32> to vector<16xf32>
    %375 = vector.shape_cast %374 : vector<16xf32> to vector<16x1xf32>
    %cst_153 = arith.constant 3.200000e+01 : f32
    %376 = vector.broadcast %cst_153 : f32 to vector<16x1xf32>
    %377 = arith.divf %375, %376 : vector<16x1xf32>
    %378 = vector.broadcast %377 : vector<16x1xf32> to vector<16x32xf32>
    %379 = arith.subf %369, %378 : vector<16x32xf32>
    %380 = vector.broadcast %377 : vector<16x1xf32> to vector<16x32xf32>
    %381 = arith.subf %369, %380 : vector<16x32xf32>
    %382 = arith.mulf %379, %381 : vector<16x32xf32>
    %cst_154 = arith.constant dense<0.000000e+00> : vector<16xf32>
    %383 = vector.multi_reduction <add>, %382, %cst_154 [1] : vector<16x32xf32> to vector<16xf32>
    %384 = vector.shape_cast %383 : vector<16xf32> to vector<16x1xf32>
    %cst_155 = arith.constant 3.200000e+01 : f32
    %385 = vector.broadcast %cst_155 : f32 to vector<16x1xf32>
    %386 = arith.divf %384, %385 : vector<16x1xf32>
    %cst_156 = arith.constant 9.99999974E-6 : f32
    %387 = vector.broadcast %cst_156 : f32 to vector<16x1xf32>
    %388 = arith.addf %386, %387 : vector<16x1xf32>
    %389 = math.rsqrt %388 : vector<16x1xf32>
    %390 = vector.broadcast %377 : vector<16x1xf32> to vector<16x32xf32>
    %391 = arith.subf %369, %390 : vector<16x32xf32>
    %392 = vector.broadcast %389 : vector<16x1xf32> to vector<16x32xf32>
    %393 = arith.mulf %391, %392 : vector<16x32xf32>
    %394 = vector.broadcast %371 : vector<1x32xf32> to vector<16x32xf32>
    %395 = arith.mulf %393, %394 : vector<16x32xf32>
    %396 = vector.broadcast %373 : vector<1x32xf32> to vector<16x32xf32>
    %397 = arith.addf %395, %396 : vector<16x32xf32>
    %398 = arith.truncf %397 : vector<16x32xf32> to vector<16x32xbf16>
    %c0_157 = arith.constant 0 : index
    %c0_158 = arith.constant 0 : index
    %399 = vector.load %arg14[%c0_157, %c0_158] : memref<32x32xbf16, #tpu.memory_space<vmem>>, vector<32x32xbf16>
    %cst_159 = arith.constant dense<0.000000e+00> : vector<16x32xf32>
    %400 = tpu.matmul %398, %399, %cst_159 {dimension_numbers = #tpu.dot_dimension_numbers<[1], [0], [0], [1], [0, 0, 1, 1], [], []>} : vector<16x32xbf16>, vector<32x32xbf16>, vector<16x32xf32> -> vector<16x32xf32>
    %c0_160 = arith.constant 0 : index
    %c0_161 = arith.constant 0 : index
    %401 = vector.load %arg15[%c0_160, %c0_161] : memref<1x32xf32, #tpu.memory_space<vmem>>, vector<1x32xf32>
    %402 = vector.broadcast %401 : vector<1x32xf32> to vector<16x32xf32>
    %403 = arith.addf %400, %402 : vector<16x32xf32>
    %404 = math.tanh %403 : vector<16x32xf32>
    %405 = arith.truncf %404 : vector<16x32xf32> to vector<16x32xbf16>
    %c0_162 = arith.constant 0 : index
    %c0_163 = arith.constant 0 : index
    %406 = vector.load %arg16[%c0_162, %c0_163] : memref<32x128xbf16, #tpu.memory_space<vmem>>, vector<32x128xbf16>
    %cst_164 = arith.constant dense<0.000000e+00> : vector<16x128xf32>
    %407 = tpu.matmul %405, %406, %cst_164 {dimension_numbers = #tpu.dot_dimension_numbers<[1], [0], [0], [1], [0, 0, 1, 1], [], []>} : vector<16x32xbf16>, vector<32x128xbf16>, vector<16x128xf32> -> vector<16x128xf32>
    %c0_165 = arith.constant 0 : index
    %c0_166 = arith.constant 0 : index
    %408 = vector.load %arg17[%c0_165, %c0_166] : memref<1x128xf32, #tpu.memory_space<vmem>>, vector<1x128xf32>
    %409 = vector.broadcast %408 : vector<1x128xf32> to vector<16x128xf32>
    %410 = arith.addf %407, %409 : vector<16x128xf32>
    %c0_167 = arith.constant 0 : index
    %c0_168 = arith.constant 0 : index
    %411 = vector.load %arg18[%c0_167, %c0_168] : memref<16x128xf32, #tpu.memory_space<vmem>>, vector<16x128xf32>
    tpu.vector_store %arg18[%c0_167, %c0_168], %410 {strides = array<i32>} : memref<16x128xf32, #tpu.memory_space<vmem>>, vector<16x128xf32>,
    return
  }
}

</mosaic_0001>

<llo_original>
// kernel: bias_classifier_forward.1
$region0: #{bias_classifier_forward.1}
  #allocation0 [shape = 'u32[]', space=smem, size = 0x4, offset = 0x4, fixed_abs, tag = 'smem constant byte address 0x4 - core index']
  #allocation1 [shape = 'u32[144,128]{1,0:T(1,128)}', space=vmem, size = 0x12000, scoped, tag = 'internal scratch']
  %s0 = inlined_call_operand.vmem [shape: f32[16,32], index: 0, kind: input, shape index: {}]
  %s1 = inlined_call_operand.vmem [shape: f32[2,8], index: 1, kind: input, shape index: {}]
  %s2 = inlined_call_operand.vmem [shape: bf16[2,32,96], index: 2, kind: input, shape index: {}]
  %s3 = inlined_call_operand.vmem [shape: f32[2,1,96], index: 3, kind: input, shape index: {}]
  %s4 = inlined_call_operand.vmem [shape: bf16[2,32,32], index: 4, kind: input, shape index: {}]
  %s5 = inlined_call_operand.vmem [shape: f32[2,1,32], index: 5, kind: input, shape index: {}]
  %s6 = inlined_call_operand.vmem [shape: f32[2,1,32], index: 6, kind: input, shape index: {}]
  %s7 = inlined_call_operand.vmem [shape: f32[2,1,32], index: 7, kind: input, shape index: {}]
  %s8 = inlined_call_operand.vmem [shape: bf16[2,32,128], index: 8, kind: input, shape index: {}]
  %s9 = inlined_call_operand.vmem [shape: f32[2,1,128], index: 9, kind: input, shape index: {}]
  %s10 = inlined_call_operand.vmem [shape: bf16[2,128,32], index: 10, kind: input, shape index: {}]
  %s11 = inlined_call_operand.vmem [shape: f32[2,1,32], index: 11, kind: input, shape index: {}]
  %s12 = inlined_call_operand.vmem [shape: f32[2,1,32], index: 12, kind: input, shape index: {}]
  %s13 = inlined_call_operand.vmem [shape: f32[2,1,32], index: 13, kind: input, shape index: {}]
  %s14 = inlined_call_operand.vmem [shape: bf16[32,32], index: 14, kind: input, shape index: {}]
  %s15 = inlined_call_operand.vmem [shape: f32[1,32], index: 15, kind: input, shape index: {}]
  %s16 = inlined_call_operand.vmem [shape: bf16[32,128], index: 16, kind: input, shape index: {}]
  %s17 = inlined_call_operand.vmem [shape: f32[1,128], index: 17, kind: input, shape index: {}]
  %s18 = inlined_call_operand.vmem [shape: f32[16,128], index: 18, kind: output, shape index: {}]
  %s19 = sld [smem:[#allocation0]]
  $region82: #{bias_classifier_forward.1} parent=0
    _
  %s21 = ssub.s32 1, %s19
  %s22 = scalar_select 0, %s21, %s19
  // Predicated region
  $region2: #{bias_classifier_forward.1} parent=0 // pred_check
    _
  $region3: #{bias_classifier_forward.1} parent=0 // pred_check_branch
    %24 = sbr.rel (0) target = $region5
  $region4: #{bias_classifier_forward.1} parent=0 // pred_region
    _
  $region5: #{bias_classifier_forward.1} parent=0 // pred_fallthru
    _
  // Predicated region
  $region6: #{bias_classifier_forward.1} parent=0 // pred_check
    _
  $region7: #{bias_classifier_forward.1} parent=0 // pred_check_branch
    %26 = sbr.rel (0) target = $region9
  $region8: #{bias_classifier_forward.1} parent=0 // pred_region
    _
  $region9: #{bias_classifier_forward.1} parent=0 // pred_fallthru
    _
  // Predicated region
  $region10: #{bias_classifier_forward.1} parent=0 // pred_check
    _
  $region11: #{bias_classifier_forward.1} parent=0 // pred_check_branch
    %28 = sbr.rel (0) target = $region13
  $region12: #{bias_classifier_forward.1} parent=0 // pred_region
    _
  $region13: #{bias_classifier_forward.1} parent=0 // pred_fallthru
    _
  // Predicated region
  $region14: #{bias_classifier_forward.1} parent=0 // pred_check
    _
  $region15: #{bias_classifier_forward.1} parent=0 // pred_check_branch
    %30 = sbr.rel (0) target = $region17
  $region16: #{bias_classifier_forward.1} parent=0 // pred_region
    _
  $region17: #{bias_classifier_forward.1} parent=0 // pred_fallthru
    _
  // Predicated region
  $region18: #{bias_classifier_forward.1} parent=0 // pred_check
    _
  $region19: #{bias_classifier_forward.1} parent=0 // pred_check_branch
    %32 = sbr.rel (0) target = $region21
  $region20: #{bias_classifier_forward.1} parent=0 // pred_region
    _
  $region21: #{bias_classifier_forward.1} parent=0 // pred_fallthru
    _
  // Predicated region
  $region22: #{bias_classifier_forward.1} parent=0 // pred_check
    _
  $region23: #{bias_classifier_forward.1} parent=0 // pred_check_branch
    %34 = sbr.rel (0) target = $region25
  $region24: #{bias_classifier_forward.1} parent=0 // pred_region
    _
  $region25: #{bias_classifier_forward.1} parent=0 // pred_fallthru
    _
  // Predicated region
  $region26: #{bias_classifier_forward.1} parent=0 // pred_check
    _
  $region27: #{bias_classifier_forward.1} parent=0 // pred_check_branch
    %36 = sbr.rel (0) target = $region29
  $region28: #{bias_classifier_forward.1} parent=0 // pred_region
    _
  $region29: #{bias_classifier_forward.1} parent=0 // pred_fallthru
    _
  // Predicated region
  $region30: #{bias_classifier_forward.1} parent=0 // pred_check
    _
  $region31: #{bias_classifier_forward.1} parent=0 // pred_check_branch
    %38 = sbr.rel (0) target = $region33
  $region32: #{bias_classifier_forward.1} parent=0 // pred_region
    _
  $region33: #{bias_classifier_forward.1} parent=0 // pred_fallthru
    _
  // Predicated region
  $region34: #{bias_classifier_forward.1} parent=0 // pred_check
    _
  $region35: #{bias_classifier_forward.1} parent=0 // pred_check_branch
    %40 = sbr.rel (0) target = $region37
  $region36: #{bias_classifier_forward.1} parent=0 // pred_region
    _
  $region37: #{bias_classifier_forward.1} parent=0 // pred_fallthru
    _
  // Predicated region
  $region38: #{bias_classifier_forward.1} parent=0 // pred_check
    _
  $region39: #{bias_classifier_forward.1} parent=0 // pred_check_branch
    %42 = sbr.rel (0) target = $region41
  $region40: #{bias_classifier_forward.1} parent=0 // pred_region
    _
  $region41: #{bias_classifier_forward.1} parent=0 // pred_fallthru
    _
  // Predicated region
  $region42: #{bias_classifier_forward.1} parent=0 // pred_check
    _
  $region43: #{bias_classifier_forward.1} parent=0 // pred_check_branch
    %44 = sbr.rel (0) target = $region45
  $region44: #{bias_classifier_forward.1} parent=0 // pred_region
    _
  $region45: #{bias_classifier_forward.1} parent=0 // pred_fallthru
    _
  // Predicated region
  $region46: #{bias_classifier_forward.1} parent=0 // pred_check
    _
  $region47: #{bias_classifier_forward.1} parent=0 // pred_check_branch
    %46 = sbr.rel (0) target = $region49
  $region48: #{bias_classifier_forward.1} parent=0 // pred_region
    _
  $region49: #{bias_classifier_forward.1} parent=0 // pred_fallthru
    _
  // Predicated region
  $region50: #{bias_classifier_forward.1} parent=0 // pred_check
    _
  $region51: #{bias_classifier_forward.1} parent=0 // pred_check_branch
    %48 = sbr.rel (0) target = $region53
  $region52: #{bias_classifier_forward.1} parent=0 // pred_region
    _
  $region53: #{bias_classifier_forward.1} parent=0 // pred_fallthru
    _
  // Predicated region
  $region54: #{bias_classifier_forward.1} parent=0 // pred_check
    _
  $region55: #{bias_classifier_forward.1} parent=0 // pred_check_branch
    %50 = sbr.rel (0) target = $region57
  $region56: #{bias_classifier_forward.1} parent=0 // pred_region
    _
  $region57: #{bias_classifier_forward.1} parent=0 // pred_fallthru
    _
  // Predicated region
  $region58: #{bias_classifier_forward.1} parent=0 // pred_check
    _
  $region59: #{bias_classifier_forward.1} parent=0 // pred_check_branch
    %52 = sbr.rel (0) target = $region61
  $region60: #{bias_classifier_forward.1} parent=0 // pred_region
    _
  $region61: #{bias_classifier_forward.1} parent=0 // pred_fallthru
    _
  // Predicated region
  $region62: #{bias_classifier_forward.1} parent=0 // pred_check
    _
  $region63: #{bias_classifier_forward.1} parent=0 // pred_check_branch
    %54 = sbr.rel (0) target = $region65
  $region64: #{bias_classifier_forward.1} parent=0 // pred_region
    _
  $region65: #{bias_classifier_forward.1} parent=0 // pred_fallthru
    _
  // Predicated region
  $region66: #{bias_classifier_forward.1} parent=0 // pred_check
    _
  $region67: #{bias_classifier_forward.1} parent=0 // pred_check_branch
    %56 = sbr.rel (0) target = $region69
  $region68: #{bias_classifier_forward.1} parent=0 // pred_region
    _
  $region69: #{bias_classifier_forward.1} parent=0 // pred_fallthru
    _
  // Predicated region
  $region70: #{bias_classifier_forward.1} parent=0 // pred_check
    _
  $region71: #{bias_classifier_forward.1} parent=0 // pred_check_branch
    %58 = sbr.rel (0) target = $region73
  $region72: #{bias_classifier_forward.1} parent=0 // pred_region
    _
  $region73: #{bias_classifier_forward.1} parent=0 // pred_fallthru
    _
  %v60 = vld [vmem:[%s0] sm:$0xff]
  %v61 = vld [vmem:[%s0 + $0x8] sm:$0xff]
  %v62 = vld [vmem:[%s1] sm:$0x3]
  %v63 = vsub.f32 1.0, %v62
  %v64 = vmul.f32 %v63, -1e+09
  %v65 = vlaneseq
  %v66 = vshrl.u32 %v65, 7
  %v67 = vsub.s32 0, %v66
  %v68 = vrot.slane %v64, %v67
  %v69 = vlaneseq
  %v70 = vshrl.u32 %v69, 7
  %v71 = vsub.s32 1, %v70
  %v72 = vrot.slane %v64, %v71
  %v73 = vpack.c.bf16 %v61, %v60
  %v74 = vld [vmem:[%s2] sm:$0xf]
  %v75 = vld [vmem:[%s2 + $0x4] sm:$0xf]
  %v76 = vld [vmem:[%s2 + $0x8] sm:$0xf]
  %v77 = vld [vmem:[%s2 + $0xc] sm:$0xf]
  %v78 = vld [vmem:[%s3] sm:$0x1]
  %v80 = vlaneseq
  %v81 = vshrl.u32 %v80, 7
  %v82 = vsub.s32 0, %v81
  %v83 = vrot.slane %v78, %v82
  %v89 = vunpack.c.l.b16 %v74
  %v90 = vunpack.c.l.b16 %v75
  %v91 = vunpack.c.l.b16 %v76
  %v92 = vunpack.c.l.b16 %v77
  %v93 = vpack.c.b16 %v90, %v89
  %v94 = vpack.c.b16 %v92, %v91
  %vm97 = vcmask 261120
  %v99 = vsel %vm97, %v73, 0
  %101 = vmatprep.subr.bf16.mxu0 0
  %102 = vmatpush1.bf16.msra.mxu0 0
  %103 = vmatprep.subr.bf16.mxu0 0
  %104 = vmatpush1.bf16.msra.mxu0 0
  %105 = vmatprep.subr.bf16.mxu0 0
  %106 = vmatpush1.bf16.msra.mxu0 0
  %107 = vmatprep.subr.bf16.mxu0 0
  %108 = vmatpush1.bf16.msra.mxu0 0
  %109 = vmatprep.subr.bf16.mxu0 0
  %110 = vmatpush1.bf16.msra.mxu0 0
  %111 = vmatprep.subr.bf16.mxu0 0
  %112 = vmatpush1.bf16.msra.mxu0 0
  %113 = vmatprep.subr.bf16.mxu0 0
  %114 = vmatpush1.bf16.msra.mxu0 %v94
  %115 = vmatprep.subr.bf16.mxu0 0
  %116 = vmatpush1.bf16.msra.mxu0 %v93
  %117 = vmatprep.subr.bf16.mxu0 0
  %118 = vmatpush2.bf16.msra.mxu0 0
  %119 = vmatprep.subr.bf16.mxu0 0
  %120 = vmatpush2.bf16.msra.mxu0 0
  %121 = vmatprep.subr.bf16.mxu0 0
  %122 = vmatpush2.bf16.msra.mxu0 0
  %123 = vmatprep.subr.bf16.mxu0 0
  %124 = vmatpush2.bf16.msra.mxu0 0
  %125 = vmatprep.subr.bf16.mxu0 0
  %126 = vmatpush2.bf16.msra.mxu0 0
  %127 = vmatprep.subr.bf16.mxu0 0
  %128 = vmatpush2.bf16.msra.mxu0 0
  %129 = vmatprep.subr.bf16.mxu0 0
  %130 = vmatpush2.bf16.msra.mxu0 0
  %131 = vmatprep.subr.bf16.mxu0 0
  %132 = vmatpush2.bf16.msra.mxu0 0
  %133 = vmatprep.mubr.bf16.mxu0 0
  %134 = vmatmul.mubr.bf16.gmra.mxu0 %v99
  %v135 = vpop.f32.mrf.mxu0
  %v136 = vadd.f32 %v83, %v135
  %v137 = vpop.f32.mrf.mxu0
  %v138 = vpop.f32.mrf.mxu0
  %v139 = vadd.f32 %v83, %v138
  %v140 = vpop.f32.mrf.mxu0
  %141 = vdwg.mxu0
  %v142 = vpack.c.bf16 %v139, %v136
  %v143 = vld [vmem:[%s4] sm:$0xf]
  %v144 = vld [vmem:[%s4 + $0x4] sm:$0xf]
  %v145 = vld [vmem:[%s4 + $0x8] sm:$0xf]
  %v146 = vld [vmem:[%s4 + $0xc] sm:$0xf]
  %148 = vrot.lane.b32.xlu0 %v142, 96
  %v149 = vpop.permute.xlu0 %148
  %vm150 = vcmask 130048
  %v152 = vsel %vm150, %v142, 0
  %v155 = vsel %vm150, %v149, 0
  %157 = vmatprep.subr.bf16.mxu0 0
  %158 = vmatpush1.bf16.xpose.msra.mxu0 0
  %159 = vmatprep.subr.bf16.mxu0 0
  %160 = vmatpush1.bf16.xpose.msra.mxu0 0
  %161 = vmatprep.subr.bf16.mxu0 0
  %162 = vmatpush1.bf16.xpose.msra.mxu0 0
  %163 = vmatprep.subr.bf16.mxu0 0
  %164 = vmatpush1.bf16.xpose.msra.mxu0 0
  %165 = vmatprep.subr.bf16.mxu0 0
  %166 = vmatpush1.bf16.xpose.msra.mxu0 0
  %167 = vmatprep.subr.bf16.mxu0 0
  %168 = vmatpush1.bf16.xpose.msra.mxu0 0
  %169 = vmatprep.subr.bf16.mxu0 0
  %170 = vmatpush1.bf16.xpose.msra.mxu0 0
  %171 = vmatprep.subr.bf16.mxu0 0
  %172 = vmatpush1.bf16.xpose.msra.mxu0 %v155
  %173 = vmatprep.subr.bf16.mxu0 0
  %174 = vmatpush2.bf16.xpose.msra.mxu0 0
  %175 = vmatprep.subr.bf16.mxu0 0
  %176 = vmatpush2.bf16.xpose.msra.mxu0 0
  %177 = vmatprep.subr.bf16.mxu0 0
  %178 = vmatpush2.bf16.xpose.msra.mxu0 0
  %179 = vmatprep.subr.bf16.mxu0 0
  %180 = vmatpush2.bf16.xpose.msra.mxu0 0
  %181 = vmatprep.subr.bf16.mxu0 0
  %182 = vmatpush2.bf16.xpose.msra.mxu0 0
  %183 = vmatprep.subr.bf16.mxu0 0
  %184 = vmatpush2.bf16.xpose.msra.mxu0 0
  %185 = vmatprep.subr.bf16.mxu0 0
  %186 = vmatpush2.bf16.xpose.msra.mxu0 0
  %187 = vmatprep.subr.bf16.mxu0 0
  %188 = vmatpush2.bf16.xpose.msra.mxu0 0
  %189 = vmatprep.mubr.bf16.mxu0 0
  %190 = vmatmul.mubr.bf16.gmra.mxu0 %v152
  %v191 = vpop.f32.mrf.mxu0
  %v192 = vadd.f32 0.0, %v191
  %v193 = vpop.f32.mrf.mxu0
  %v194 = vpop.f32.mrf.mxu0
  %v195 = vpop.f32.mrf.mxu0
  %196 = vdwg.mxu0
  %v197 = vmul.f32 %v192, 0.25
  %v198 = vadd.f32 %v197, %v68
  %vm199 = vcmask 64512
  %v200 = vsel %vm199, %v198, -inf
  %201 = vmax.xlane.f32.xlu0 %v200
  %v202 = vpop.xlane.xlu0 %201
  %v203 = vsub.f32 %v198, %v202
  %v204 = vmul.f32 %v203, 1.442695
  %v205 = vpow.pop %v204
  %v206 = vsel %vm199, %v205, 0.0
  %207 = vadd.xlane.f32.xlu0 %v206
  %v208 = vpop.xlane.xlu0 %207
  %v209 = vrcp.pop %v208
  %v210 = vmul.f32 %v205, %v209
  %v211 = vpack.c.bf16 %v210, %v210
  %212 = vrot.lane.b32.xlu0 %v142, 64
  %v213 = vpop.permute.xlu0 %212
  %v215 = vsel %vm199, %v211, 0
  %vm217 = vcmask 1043456
  %v219 = vsel %vm217, %v213, 0
  %221 = vmatprep.subr.bf16.mxu0 0
  %222 = vmatpush1.bf16.msra.mxu0 0
  %223 = vmatprep.subr.bf16.mxu0 0
  %224 = vmatpush1.bf16.msra.mxu0 0
  %225 = vmatprep.subr.bf16.mxu0 0
  %226 = vmatpush1.bf16.msra.mxu0 0
  %227 = vmatprep.subr.bf16.mxu0 0
  %228 = vmatpush1.bf16.msra.mxu0 0
  %229 = vmatprep.subr.bf16.mxu0 0
  %230 = vmatpush1.bf16.msra.mxu0 0
  %231 = vmatprep.subr.bf16.mxu0 0
  %232 = vmatpush1.bf16.msra.mxu0 0
  %233 = vmatprep.subr.bf16.mxu0 0
  %234 = vmatpush1.bf16.msra.mxu0 0
  %235 = vmatprep.subr.bf16.mxu0 0
  %236 = vmatpush1.bf16.msra.mxu0 %v219
  %237 = vmatprep.subr.bf16.mxu0 0
  %238 = vmatpush2.bf16.msra.mxu0 0
  %239 = vmatprep.subr.bf16.mxu0 0
  %240 = vmatpush2.bf16.msra.mxu0 0
  %241 = vmatprep.subr.bf16.mxu0 0
  %242 = vmatpush2.bf16.msra.mxu0 0
  %243 = vmatprep.subr.bf16.mxu0 0
  %244 = vmatpush2.bf16.msra.mxu0 0
  %245 = vmatprep.subr.bf16.mxu0 0
  %246 = vmatpush2.bf16.msra.mxu0 0
  %247 = vmatprep.subr.bf16.mxu0 0
  %248 = vmatpush2.bf16.msra.mxu0 0
  %249 = vmatprep.subr.bf16.mxu0 0
  %250 = vmatpush2.bf16.msra.mxu0 0
  %251 = vmatprep.subr.bf16.mxu0 0
  %252 = vmatpush2.bf16.msra.mxu0 0
  %253 = vmatprep.mubr.bf16.mxu0 0
  %254 = vmatmul.mubr.bf16.gmra.mxu0 %v215
  %v255 = vpop.f32.mrf.mxu0
  %v256 = vadd.f32 0.0, %v255
  %v257 = vpop.f32.mrf.mxu0
  %v258 = vpop.f32.mrf.mxu0
  %v259 = vpop.f32.mrf.mxu0
  %260 = vdwg.mxu0
  %v261 = vpack.c.bf16 %v256, %v256
  %262 = vrot.lane.b32.xlu0 %v142, 112
  %v263 = vpop.permute.xlu0 %262
  %264 = vrot.lane.b32.xlu0 %v142, 80
  %v265 = vpop.permute.xlu0 %264
  %v267 = vsel %vm150, %v263, 0
  %v270 = vsel %vm150, %v265, 0
  %272 = vmatprep.subr.bf16.mxu0 0
  %273 = vmatpush1.bf16.xpose.msra.mxu0 0
  %274 = vmatprep.subr.bf16.mxu0 0
  %275 = vmatpush1.bf16.xpose.msra.mxu0 0
  %276 = vmatprep.subr.bf16.mxu0 0
  %277 = vmatpush1.bf16.xpose.msra.mxu0 0
  %278 = vmatprep.subr.bf16.mxu0 0
  %279 = vmatpush1.bf16.xpose.msra.mxu0 0
  %280 = vmatprep.subr.bf16.mxu0 0
  %281 = vmatpush1.bf16.xpose.msra.mxu0 0
  %282 = vmatprep.subr.bf16.mxu0 0
  %283 = vmatpush1.bf16.xpose.msra.mxu0 0
  %284 = vmatprep.subr.bf16.mxu0 0
  %285 = vmatpush1.bf16.xpose.msra.mxu0 0
  %286 = vmatprep.subr.bf16.mxu0 0
  %287 = vmatpush1.bf16.xpose.msra.mxu0 %v270
  %288 = vmatprep.subr.bf16.mxu0 0
  %289 = vmatpush2.bf16.xpose.msra.mxu0 0
  %290 = vmatprep.subr.bf16.mxu0 0
  %291 = vmatpush2.bf16.xpose.msra.mxu0 0
  %292 = vmatprep.subr.bf16.mxu0 0
  %293 = vmatpush2.bf16.xpose.msra.mxu0 0
  %294 = vmatprep.subr.bf16.mxu0 0
  %295 = vmatpush2.bf16.xpose.msra.mxu0 0
  %296 = vmatprep.subr.bf16.mxu0 0
  %297 = vmatpush2.bf16.xpose.msra.mxu0 0
  %298 = vmatprep.subr.bf16.mxu0 0
  %299 = vmatpush2.bf16.xpose.msra.mxu0 0
  %300 = vmatprep.subr.bf16.mxu0 0
  %301 = vmatpush2.bf16.xpose.msra.mxu0 0
  %302 = vmatprep.subr.bf16.mxu0 0
  %303 = vmatpush2.bf16.xpose.msra.mxu0 0
  %304 = vmatprep.mubr.bf16.mxu0 0
  %305 = vmatmul.mubr.bf16.gmra.mxu0 %v267
  %v306 = vpop.f32.mrf.mxu0
  %v307 = vadd.f32 0.0, %v306
  %v308 = vpop.f32.mrf.mxu0
  %v309 = vpop.f32.mrf.mxu0
  %v310 = vpop.f32.mrf.mxu0
  %311 = vdwg.mxu0
  %v312 = vmul.f32 %v307, 0.25
  %v313 = vadd.f32 %v312, %v68
  %v314 = vsel %vm199, %v313, -inf
  %315 = vmax.xlane.f32.xlu0 %v314
  %v316 = vpop.xlane.xlu0 %315
  %v317 = vsub.f32 %v313, %v316
  %v318 = vmul.f32 %v317, 1.442695
  %v319 = vpow.pop %v318
  %v320 = vsel %vm199, %v319, 0.0
  %321 = vadd.xlane.f32.xlu0 %v320
  %v322 = vpop.xlane.xlu0 %321
  %v323 = vrcp.pop %v322
  %v324 = vmul.f32 %v319, %v323
  %v325 = vpack.c.bf16 %v324, %v324
  %326 = vrot.lane.b32.xlu0 %v142, 48
  %v327 = vpop.permute.xlu0 %326
  %v329 = vsel %vm199, %v325, 0
  %v332 = vsel %vm217, %v327, 0
  %334 = vmatprep.subr.bf16.mxu0 0
  %335 = vmatpush1.bf16.msra.mxu0 0
  %336 = vmatprep.subr.bf16.mxu0 0
  %337 = vmatpush1.bf16.msra.mxu0 0
  %338 = vmatprep.subr.bf16.mxu0 0
  %339 = vmatpush1.bf16.msra.mxu0 0
  %340 = vmatprep.subr.bf16.mxu0 0
  %341 = vmatpush1.bf16.msra.mxu0 0
  %342 = vmatprep.subr.bf16.mxu0 0
  %343 = vmatpush1.bf16.msra.mxu0 0
  %344 = vmatprep.subr.bf16.mxu0 0
  %345 = vmatpush1.bf16.msra.mxu0 0
  %346 = vmatprep.subr.bf16.mxu0 0
  %347 = vmatpush1.bf16.msra.mxu0 0
  %348 = vmatprep.subr.bf16.mxu0 0
  %349 = vmatpush1.bf16.msra.mxu0 %v332
  %350 = vmatprep.subr.bf16.mxu0 0
  %351 = vmatpush2.bf16.msra.mxu0 0
  %352 = vmatprep.subr.bf16.mxu0 0
  %353 = vmatpush2.bf16.msra.mxu0 0
  %354 = vmatprep.subr.bf16.mxu0 0
  %355 = vmatpush2.bf16.msra.mxu0 0
  %356 = vmatprep.subr.bf16.mxu0 0
  %357 = vmatpush2.bf16.msra.mxu0 0
  %358 = vmatprep.subr.bf16.mxu0 0
  %359 = vmatpush2.bf16.msra.mxu0 0
  %360 = vmatprep.subr.bf16.mxu0 0
  %361 = vmatpush2.bf16.msra.mxu0 0
  %362 = vmatprep.subr.bf16.mxu0 0
  %363 = vmatpush2.bf16.msra.mxu0 0
  %364 = vmatprep.subr.bf16.mxu0 0
  %365 = vmatpush2.bf16.msra.mxu0 0
  %366 = vmatprep.mubr.bf16.mxu0 0
  %367 = vmatmul.mubr.bf16.gmra.mxu0 %v329
  %v368 = vpop.f32.mrf.mxu0
  %v369 = vadd.f32 0.0, %v368
  %v370 = vpop.f32.mrf.mxu0
  %v371 = vpop.f32.mrf.mxu0
  %v372 = vpop.f32.mrf.mxu0
  %373 = vdwg.mxu0
  %v374 = vpack.c.bf16 %v369, %v369
  %v377 = vunpack.c.l.b16 %v145
  %v378 = vunpack.c.l.b16 %v146
  %v379 = vpack.c.b16 %v378, %v377
  %v382 = vsel %vm150, %v374, 0
  %384 = vmatprep.subr.bf16.mxu0 0
  %385 = vmatpush1.bf16.msra.mxu0 0
  %386 = vmatprep.subr.bf16.mxu0 0
  %387 = vmatpush1.bf16.msra.mxu0 0
  %388 = vmatprep.subr.bf16.mxu0 0
  %389 = vmatpush1.bf16.msra.mxu0 0
  %390 = vmatprep.subr.bf16.mxu0 0
  %391 = vmatpush1.bf16.msra.mxu0 0
  %392 = vmatprep.subr.bf16.mxu0 0
  %393 = vmatpush1.bf16.msra.mxu0 0
  %394 = vmatprep.subr.bf16.mxu0 0
  %395 = vmatpush1.bf16.msra.mxu0 0
  %396 = vmatprep.subr.bf16.mxu0 0
  %397 = vmatpush1.bf16.msra.mxu0 0
  %398 = vmatprep.subr.bf16.mxu0 0
  %399 = vmatpush1.bf16.msra.mxu0 %v379
  %400 = vmatprep.subr.bf16.mxu0 0
  %401 = vmatpush2.bf16.msra.mxu0 0
  %402 = vmatprep.subr.bf16.mxu0 0
  %403 = vmatpush2.bf16.msra.mxu0 0
  %404 = vmatprep.subr.bf16.mxu0 0
  %405 = vmatpush2.bf16.msra.mxu0 0
  %406 = vmatprep.subr.bf16.mxu0 0
  %407 = vmatpush2.bf16.msra.mxu0 0
  %408 = vmatprep.subr.bf16.mxu0 0
  %409 = vmatpush2.bf16.msra.mxu0 0
  %410 = vmatprep.subr.bf16.mxu0 0
  %411 = vmatpush2.bf16.msra.mxu0 0
  %412 = vmatprep.subr.bf16.mxu0 0
  %413 = vmatpush2.bf16.msra.mxu0 0
  %414 = vmatprep.subr.bf16.mxu0 0
  %415 = vmatpush2.bf16.msra.mxu0 0
  %416 = vmatprep.mubr.bf16.mxu0 0
  %417 = vmatmul.mubr.bf16.gmra.mxu0 %v382
  %v418 = vpop.f32.mrf.mxu0
  %v419 = vadd.f32 0.0, %v418
  %v420 = vpop.f32.mrf.mxu0
  %v421 = vpop.f32.mrf.mxu0
  %v422 = vpop.f32.mrf.mxu0
  %423 = vdwg.mxu0
  %v426 = vunpack.c.l.b16 %v143
  %v427 = vunpack.c.l.b16 %v144
  %v428 = vpack.c.b16 %v427, %v426
  %v431 = vsel %vm150, %v261, 0
  %433 = vmatprep.subr.bf16.mxu0 0
  %434 = vmatpush1.bf16.msra.mxu0 0
  %435 = vmatprep.subr.bf16.mxu0 0
  %436 = vmatpush1.bf16.msra.mxu0 0
  %437 = vmatprep.subr.bf16.mxu0 0
  %438 = vmatpush1.bf16.msra.mxu0 0
  %439 = vmatprep.subr.bf16.mxu0 0
  %440 = vmatpush1.bf16.msra.mxu0 0
  %441 = vmatprep.subr.bf16.mxu0 0
  %442 = vmatpush1.bf16.msra.mxu0 0
  %443 = vmatprep.subr.bf16.mxu0 0
  %444 = vmatpush1.bf16.msra.mxu0 0
  %445 = vmatprep.subr.bf16.mxu0 0
  %446 = vmatpush1.bf16.msra.mxu0 0
  %447 = vmatprep.subr.bf16.mxu0 0
  %448 = vmatpush1.bf16.msra.mxu0 %v428
  %449 = vmatprep.subr.bf16.mxu0 0
  %450 = vmatpush2.bf16.msra.mxu0 0
  %451 = vmatprep.subr.bf16.mxu0 0
  %452 = vmatpush2.bf16.msra.mxu0 0
  %453 = vmatprep.subr.bf16.mxu0 0
  %454 = vmatpush2.bf16.msra.mxu0 0
  %455 = vmatprep.subr.bf16.mxu0 0
  %456 = vmatpush2.bf16.msra.mxu0 0
  %457 = vmatprep.subr.bf16.mxu0 0
  %458 = vmatpush2.bf16.msra.mxu0 0
  %459 = vmatprep.subr.bf16.mxu0 0
  %460 = vmatpush2.bf16.msra.mxu0 0
  %461 = vmatprep.subr.bf16.mxu0 0
  %462 = vmatpush2.bf16.msra.mxu0 0
  %463 = vmatprep.subr.bf16.mxu0 0
  %464 = vmatpush2.bf16.msra.mxu0 0
  %465 = vmatprep.mubr.bf16.mxu0 0
  %466 = vmatmul.mubr.bf16.gmra.mxu0 %v431
  %v467 = vpop.f32.mrf.mxu0
  %v468 = vadd.f32 %v419, %v467
  %v469 = vpop.f32.mrf.mxu0
  %v470 = vpop.f32.mrf.mxu0
  %v471 = vpop.f32.mrf.mxu0
  %472 = vdwg.mxu0
  %v473 = vrot.slane %v142, 4
  %474 = vrot.lane.b32.xlu0 %v473, 96
  %v475 = vpop.permute.xlu0 %474
  %v477 = vsel %vm150, %v473, 0
  %v480 = vsel %vm150, %v475, 0
  %482 = vmatprep.subr.bf16.mxu0 0
  %483 = vmatpush1.bf16.xpose.msra.mxu0 0
  %484 = vmatprep.subr.bf16.mxu0 0
  %485 = vmatpush1.bf16.xpose.msra.mxu0 0
  %486 = vmatprep.subr.bf16.mxu0 0
  %487 = vmatpush1.bf16.xpose.msra.mxu0 0
  %488 = vmatprep.subr.bf16.mxu0 0
  %489 = vmatpush1.bf16.xpose.msra.mxu0 0
  %490 = vmatprep.subr.bf16.mxu0 0
  %491 = vmatpush1.bf16.xpose.msra.mxu0 0
  %492 = vmatprep.subr.bf16.mxu0 0
  %493 = vmatpush1.bf16.xpose.msra.mxu0 0
  %494 = vmatprep.subr.bf16.mxu0 0
  %495 = vmatpush1.bf16.xpose.msra.mxu0 0
  %496 = vmatprep.subr.bf16.mxu0 0
  %497 = vmatpush1.bf16.xpose.msra.mxu0 %v480
  %498 = vmatprep.subr.bf16.mxu0 0
  %499 = vmatpush2.bf16.xpose.msra.mxu0 0
  %500 = vmatprep.subr.bf16.mxu0 0
  %501 = vmatpush2.bf16.xpose.msra.mxu0 0
  %502 = vmatprep.subr.bf16.mxu0 0
  %503 = vmatpush2.bf16.xpose.msra.mxu0 0
  %504 = vmatprep.subr.bf16.mxu0 0
  %505 = vmatpush2.bf16.xpose.msra.mxu0 0
  %506 = vmatprep.subr.bf16.mxu0 0
  %507 = vmatpush2.bf16.xpose.msra.mxu0 0
  %508 = vmatprep.subr.bf16.mxu0 0
  %509 = vmatpush2.bf16.xpose.msra.mxu0 0
  %510 = vmatprep.subr.bf16.mxu0 0
  %511 = vmatpush2.bf16.xpose.msra.mxu0 0
  %512 = vmatprep.subr.bf16.mxu0 0
  %513 = vmatpush2.bf16.xpose.msra.mxu0 0
  %514 = vmatprep.mubr.bf16.mxu0 0
  %515 = vmatmul.mubr.bf16.gmra.mxu0 %v477
  %v516 = vpop.f32.mrf.mxu0
  %v517 = vadd.f32 0.0, %v516
  %v518 = vpop.f32.mrf.mxu0
  %v519 = vpop.f32.mrf.mxu0
  %v520 = vpop.f32.mrf.mxu0
  %521 = vdwg.mxu0
  %v522 = vmul.f32 %v517, 0.25
  %v523 = vadd.f32 %v522, %v72
  %v524 = vsel %vm199, %v523, -inf
  %525 = vmax.xlane.f32.xlu0 %v524
  %v526 = vpop.xlane.xlu0 %525
  %v527 = vsub.f32 %v523, %v526
  %v528 = vmul.f32 %v527, 1.442695
  %v529 = vpow.pop %v528
  %v530 = vsel %vm199, %v529, 0.0
  %531 = vadd.xlane.f32.xlu0 %v530
  %v532 = vpop.xlane.xlu0 %531
  %v533 = vrcp.pop %v532
  %v534 = vmul.f32 %v529, %v533
  %v535 = vpack.c.bf16 %v534, %v534
  %536 = vrot.lane.b32.xlu0 %v473, 64
  %v537 = vpop.permute.xlu0 %536
  %v539 = vsel %vm199, %v535, 0
  %v542 = vsel %vm217, %v537, 0
  %544 = vmatprep.subr.bf16.mxu0 0
  %545 = vmatpush1.bf16.msra.mxu0 0
  %546 = vmatprep.subr.bf16.mxu0 0
  %547 = vmatpush1.bf16.msra.mxu0 0
  %548 = vmatprep.subr.bf16.mxu0 0
  %549 = vmatpush1.bf16.msra.mxu0 0
  %550 = vmatprep.subr.bf16.mxu0 0
  %551 = vmatpush1.bf16.msra.mxu0 0
  %552 = vmatprep.subr.bf16.mxu0 0
  %553 = vmatpush1.bf16.msra.mxu0 0
  %554 = vmatprep.subr.bf16.mxu0 0
  %555 = vmatpush1.bf16.msra.mxu0 0
  %556 = vmatprep.subr.bf16.mxu0 0
  %557 = vmatpush1.bf16.msra.mxu0 0
  %558 = vmatprep.subr.bf16.mxu0 0
  %559 = vmatpush1.bf16.msra.mxu0 %v542
  %560 = vmatprep.subr.bf16.mxu0 0
  %561 = vmatpush2.bf16.msra.mxu0 0
  %562 = vmatprep.subr.bf16.mxu0 0
  %563 = vmatpush2.bf16.msra.mxu0 0
  %564 = vmatprep.subr.bf16.mxu0 0
  %565 = vmatpush2.bf16.msra.mxu0 0
  %566 = vmatprep.subr.bf16.mxu0 0
  %567 = vmatpush2.bf16.msra.mxu0 0
  %568 = vmatprep.subr.bf16.mxu0 0
  %569 = vmatpush2.bf16.msra.mxu0 0
  %570 = vmatprep.subr.bf16.mxu0 0
  %571 = vmatpush2.bf16.msra.mxu0 0
  %572 = vmatprep.subr.bf16.mxu0 0
  %573 = vmatpush2.bf16.msra.mxu0 0
  %574 = vmatprep.subr.bf16.mxu0 0
  %575 = vmatpush2.bf16.msra.mxu0 0
  %576 = vmatprep.mubr.bf16.mxu0 0
  %577 = vmatmul.mubr.bf16.gmra.mxu0 %v539
  %v578 = vpop.f32.mrf.mxu0
  %v579 = vadd.f32 0.0, %v578
  %v580 = vpop.f32.mrf.mxu0
  %v581 = vpop.f32.mrf.mxu0
  %v582 = vpop.f32.mrf.mxu0
  %583 = vdwg.mxu0
  %v584 = vpack.c.bf16 %v579, %v579
  %585 = vrot.lane.b32.xlu0 %v473, 112
  %v586 = vpop.permute.xlu0 %585
  %587 = vrot.lane.b32.xlu0 %v473, 80
  %v588 = vpop.permute.xlu0 %587
  %v590 = vsel %vm150, %v586, 0
  %v593 = vsel %vm150, %v588, 0
  %595 = vmatprep.subr.bf16.mxu0 0
  %596 = vmatpush1.bf16.xpose.msra.mxu0 0
  %597 = vmatprep.subr.bf16.mxu0 0
  %598 = vmatpush1.bf16.xpose.msra.mxu0 0
  %599 = vmatprep.subr.bf16.mxu0 0
  %600 = vmatpush1.bf16.xpose.msra.mxu0 0
  %601 = vmatprep.subr.bf16.mxu0 0
  %602 = vmatpush1.bf16.xpose.msra.mxu0 0
  %603 = vmatprep.subr.bf16.mxu0 0
  %604 = vmatpush1.bf16.xpose.msra.mxu0 0
  %605 = vmatprep.subr.bf16.mxu0 0
  %606 = vmatpush1.bf16.xpose.msra.mxu0 0
  %607 = vmatprep.subr.bf16.mxu0 0
  %608 = vmatpush1.bf16.xpose.msra.mxu0 0
  %609 = vmatprep.subr.bf16.mxu0 0
  %610 = vmatpush1.bf16.xpose.msra.mxu0 %v593
  %611 = vmatprep.subr.bf16.mxu0 0
  %612 = vmatpush2.bf16.xpose.msra.mxu0 0
  %613 = vmatprep.subr.bf16.mxu0 0
  %614 = vmatpush2.bf16.xpose.msra.mxu0 0
  %615 = vmatprep.subr.bf16.mxu0 0
  %616 = vmatpush2.bf16.xpose.msra.mxu0 0
  %617 = vmatprep.subr.bf16.mxu0 0
  %618 = vmatpush2.bf16.xpose.msra.mxu0 0
  %619 = vmatprep.subr.bf16.mxu0 0
  %620 = vmatpush2.bf16.xpose.msra.mxu0 0
  %621 = vmatprep.subr.bf16.mxu0 0
  %622 = vmatpush2.bf16.xpose.msra.mxu0 0
  %623 = vmatprep.subr.bf16.mxu0 0
  %624 = vmatpush2.bf16.xpose.msra.mxu0 0
  %625 = vmatprep.subr.bf16.mxu0 0
  %626 = vmatpush2.bf16.xpose.msra.mxu0 0
  %627 = vmatprep.mubr.bf16.mxu0 0
  %628 = vmatmul.mubr.bf16.gmra.mxu0 %v590
  %v629 = vpop.f32.mrf.mxu0
  %v630 = vadd.f32 0.0, %v629
  %v631 = vpop.f32.mrf.mxu0
  %v632 = vpop.f32.mrf.mxu0
  %v633 = vpop.f32.mrf.mxu0
  %634 = vdwg.mxu0
  %v635 = vmul.f32 %v630, 0.25
  %v636 = vadd.f32 %v635, %v72
  %v637 = vsel %vm199, %v636, -inf
  %638 = vmax.xlane.f32.xlu0 %v637
  %v639 = vpop.xlane.xlu0 %638
  %v640 = vsub.f32 %v636, %v639
  %v641 = vmul.f32 %v640, 1.442695
  %v642 = vpow.pop %v641
  %v643 = vsel %vm199, %v642, 0.0
  %644 = vadd.xlane.f32.xlu0 %v643
  %v645 = vpop.xlane.xlu0 %644
  %v646 = vrcp.pop %v645
  %v647 = vmul.f32 %v642, %v646
  %v648 = vpack.c.bf16 %v647, %v647
  %649 = vrot.lane.b32.xlu0 %v473, 48
  %v650 = vpop.permute.xlu0 %649
  %v652 = vsel %vm199, %v648, 0
  %v655 = vsel %vm217, %v650, 0
  %657 = vmatprep.subr.bf16.mxu0 0
  %658 = vmatpush1.bf16.msra.mxu0 0
  %659 = vmatprep.subr.bf16.mxu0 0
  %660 = vmatpush1.bf16.msra.mxu0 0
  %661 = vmatprep.subr.bf16.mxu0 0
  %662 = vmatpush1.bf16.msra.mxu0 0
  %663 = vmatprep.subr.bf16.mxu0 0
  %664 = vmatpush1.bf16.msra.mxu0 0
  %665 = vmatprep.subr.bf16.mxu0 0
  %666 = vmatpush1.bf16.msra.mxu0 0
  %667 = vmatprep.subr.bf16.mxu0 0
  %668 = vmatpush1.bf16.msra.mxu0 0
  %669 = vmatprep.subr.bf16.mxu0 0
  %670 = vmatpush1.bf16.msra.mxu0 0
  %671 = vmatprep.subr.bf16.mxu0 0
  %672 = vmatpush1.bf16.msra.mxu0 %v655
  %673 = vmatprep.subr.bf16.mxu0 0
  %674 = vmatpush2.bf16.msra.mxu0 0
  %675 = vmatprep.subr.bf16.mxu0 0
  %676 = vmatpush2.bf16.msra.mxu0 0
  %677 = vmatprep.subr.bf16.mxu0 0
  %678 = vmatpush2.bf16.msra.mxu0 0
  %679 = vmatprep.subr.bf16.mxu0 0
  %680 = vmatpush2.bf16.msra.mxu0 0
  %681 = vmatprep.subr.bf16.mxu0 0
  %682 = vmatpush2.bf16.msra.mxu0 0
  %683 = vmatprep.subr.bf16.mxu0 0
  %684 = vmatpush2.bf16.msra.mxu0 0
  %685 = vmatprep.subr.bf16.mxu0 0
  %686 = vmatpush2.bf16.msra.mxu0 0
  %687 = vmatprep.subr.bf16.mxu0 0
  %688 = vmatpush2.bf16.msra.mxu0 0
  %689 = vmatprep.mubr.bf16.mxu0 0
  %690 = vmatmul.mubr.bf16.gmra.mxu0 %v652
  %v691 = vpop.f32.mrf.mxu0
  %v692 = vadd.f32 0.0, %v691
  %v693 = vpop.f32.mrf.mxu0
  %v694 = vpop.f32.mrf.mxu0
  %v695 = vpop.f32.mrf.mxu0
  %696 = vdwg.mxu0
  %v697 = vpack.c.bf16 %v692, %v692
  %v699 = vsel %vm150, %v697, 0
  %701 = vmatprep.subr.bf16.mxu0 0
  %702 = vmatpush1.bf16.msra.mxu0 0
  %703 = vmatprep.subr.bf16.mxu0 0
  %704 = vmatpush1.bf16.msra.mxu0 0
  %705 = vmatprep.subr.bf16.mxu0 0
  %706 = vmatpush1.bf16.msra.mxu0 0
  %707 = vmatprep.subr.bf16.mxu0 0
  %708 = vmatpush1.bf16.msra.mxu0 0
  %709 = vmatprep.subr.bf16.mxu0 0
  %710 = vmatpush1.bf16.msra.mxu0 0
  %711 = vmatprep.subr.bf16.mxu0 0
  %712 = vmatpush1.bf16.msra.mxu0 0
  %713 = vmatprep.subr.bf16.mxu0 0
  %714 = vmatpush1.bf16.msra.mxu0 0
  %715 = vmatprep.subr.bf16.mxu0 0
  %716 = vmatpush1.bf16.msra.mxu0 %v379
  %717 = vmatprep.subr.bf16.mxu0 0
  %718 = vmatpush2.bf16.msra.mxu0 0
  %719 = vmatprep.subr.bf16.mxu0 0
  %720 = vmatpush2.bf16.msra.mxu0 0
  %721 = vmatprep.subr.bf16.mxu0 0
  %722 = vmatpush2.bf16.msra.mxu0 0
  %723 = vmatprep.subr.bf16.mxu0 0
  %724 = vmatpush2.bf16.msra.mxu0 0
  %725 = vmatprep.subr.bf16.mxu0 0
  %726 = vmatpush2.bf16.msra.mxu0 0
  %727 = vmatprep.subr.bf16.mxu0 0
  %728 = vmatpush2.bf16.msra.mxu0 0
  %729 = vmatprep.subr.bf16.mxu0 0
  %730 = vmatpush2.bf16.msra.mxu0 0
  %731 = vmatprep.subr.bf16.mxu0 0
  %732 = vmatpush2.bf16.msra.mxu0 0
  %733 = vmatprep.mubr.bf16.mxu0 0
  %734 = vmatmul.mubr.bf16.gmra.mxu0 %v699
  %v735 = vpop.f32.mrf.mxu0
  %v736 = vadd.f32 0.0, %v735
  %v737 = vpop.f32.mrf.mxu0
  %v738 = vpop.f32.mrf.mxu0
  %v739 = vpop.f32.mrf.mxu0
  %740 = vdwg.mxu0
  %v742 = vsel %vm150, %v584, 0
  %744 = vmatprep.subr.bf16.mxu0 0
  %745 = vmatpush1.bf16.msra.mxu0 0
  %746 = vmatprep.subr.bf16.mxu0 0
  %747 = vmatpush1.bf16.msra.mxu0 0
  %748 = vmatprep.subr.bf16.mxu0 0
  %749 = vmatpush1.bf16.msra.mxu0 0
  %750 = vmatprep.subr.bf16.mxu0 0
  %751 = vmatpush1.bf16.msra.mxu0 0
  %752 = vmatprep.subr.bf16.mxu0 0
  %753 = vmatpush1.bf16.msra.mxu0 0
  %754 = vmatprep.subr.bf16.mxu0 0
  %755 = vmatpush1.bf16.msra.mxu0 0
  %756 = vmatprep.subr.bf16.mxu0 0
  %757 = vmatpush1.bf16.msra.mxu0 0
  %758 = vmatprep.subr.bf16.mxu0 0
  %759 = vmatpush1.bf16.msra.mxu0 %v428
  %760 = vmatprep.subr.bf16.mxu0 0
  %761 = vmatpush2.bf16.msra.mxu0 0
  %762 = vmatprep.subr.bf16.mxu0 0
  %763 = vmatpush2.bf16.msra.mxu0 0
  %764 = vmatprep.subr.bf16.mxu0 0
  %765 = vmatpush2.bf16.msra.mxu0 0
  %766 = vmatprep.subr.bf16.mxu0 0
  %767 = vmatpush2.bf16.msra.mxu0 0
  %768 = vmatprep.subr.bf16.mxu0 0
  %769 = vmatpush2.bf16.msra.mxu0 0
  %770 = vmatprep.subr.bf16.mxu0 0
  %771 = vmatpush2.bf16.msra.mxu0 0
  %772 = vmatprep.subr.bf16.mxu0 0
  %773 = vmatpush2.bf16.msra.mxu0 0
  %774 = vmatprep.subr.bf16.mxu0 0
  %775 = vmatpush2.bf16.msra.mxu0 0
  %776 = vmatprep.mubr.bf16.mxu0 0
  %777 = vmatmul.mubr.bf16.gmra.mxu0 %v742
  %v778 = vpop.f32.mrf.mxu0
  %v779 = vadd.f32 %v736, %v778
  %v780 = vpop.f32.mrf.mxu0
  %v781 = vpop.f32.mrf.mxu0
  %v782 = vpop.f32.mrf.mxu0
  %783 = vdwg.mxu0
  %v784 = vld [vmem:[%s5] sm:$0x1]
  %v786 = vlaneseq
  %v787 = vshrl.u32 %v786, 7
  %v788 = vsub.s32 0, %v787
  %v789 = vrot.slane %v784, %v788
  %v791 = vadd.f32 %v468, %v789
  %v792 = vadd.f32 %v779, %v789
  %v793 = vadd.f32 %v60, %v791
  %v794 = vadd.f32 %v61, %v792
  %v795 = vld [vmem:[%s6] sm:$0x1]
  %v796 = vld [vmem:[%s7] sm:$0x1]
  %v797 = vsel %vm97, %v793, 0.0
  %798 = vadd.xlane.f32.xlu0 %v797
  %v799 = vpop.xlane.xlu0 %798
  %v800 = vsel %vm97, %v794, 0.0
  %801 = vadd.xlane.f32.xlu0 %v800
  %v802 = vpop.xlane.xlu0 %801
  %v803 = vrcp.pop 32.0
  %v804 = vmul.f32 %v799, %v803
  %v805 = vmul.f32 %v802, %v803
  %v806 = vsub.f32 %v793, %v804
  %v807 = vsub.f32 %v794, %v805
  %v808 = vmul.f32 %v806, %v806
  %v809 = vmul.f32 %v807, %v807
  %v810 = vsel %vm97, %v808, 0.0
  %811 = vadd.xlane.f32.xlu0 %v810
  %v812 = vpop.xlane.xlu0 %811
  %v813 = vsel %vm97, %v809, 0.0
  %814 = vadd.xlane.f32.xlu0 %v813
  %v815 = vpop.xlane.xlu0 %814
  %v816 = vmul.f32 %v812, %v803
  %v817 = vmul.f32 %v815, %v803
  %v818 = vadd.f32 %v816, 1e-05
  %v819 = vadd.f32 %v817, 1e-05
  %v820 = vrsqrt.pop %v818
  %v821 = vrsqrt.pop %v819
  %v822 = vmul.f32 %v806, %v820
  %v823 = vmul.f32 %v807, %v821
  %v825 = vlaneseq
  %v826 = vshrl.u32 %v825, 7
  %v827 = vsub.s32 0, %v826
  %v828 = vrot.slane %v795, %v827
  %v830 = vmul.f32 %v822, %v828
  %v831 = vmul.f32 %v823, %v828
  %v833 = vlaneseq
  %v834 = vshrl.u32 %v833, 7
  %v835 = vsub.s32 0, %v834
  %v836 = vrot.slane %v796, %v835
  %v838 = vadd.f32 %v830, %v836
  %v839 = vadd.f32 %v831, %v836
  %v840 = vpack.c.bf16 %v839, %v838
  %v841 = vld [vmem:[%s8] sm:$0xf]
  %v842 = vld [vmem:[%s8 + $0x4] sm:$0xf]
  %v843 = vld [vmem:[%s8 + $0x8] sm:$0xf]
  %v844 = vld [vmem:[%s8 + $0xc] sm:$0xf]
  %v845 = vld [vmem:[%s9] sm:$0x1]
  %v847 = vlaneseq
  %v848 = vshrl.u32 %v847, 7
  %v849 = vsub.s32 0, %v848
  %v850 = vrot.slane %v845, %v849
  %v856 = vunpack.c.l.b16 %v841
  %v857 = vunpack.c.l.b16 %v842
  %v858 = vunpack.c.l.b16 %v843
  %v859 = vunpack.c.l.b16 %v844
  %v860 = vpack.c.b16 %v857, %v856
  %v861 = vpack.c.b16 %v859, %v858
  %v865 = vsel %vm97, %v840, 0
  %867 = vmatprep.subr.bf16.mxu0 0
  %868 = vmatpush1.bf16.msra.mxu0 0
  %869 = vmatprep.subr.bf16.mxu0 0
  %870 = vmatpush1.bf16.msra.mxu0 0
  %871 = vmatprep.subr.bf16.mxu0 0
  %872 = vmatpush1.bf16.msra.mxu0 0
  %873 = vmatprep.subr.bf16.mxu0 0
  %874 = vmatpush1.bf16.msra.mxu0 0
  %875 = vmatprep.subr.bf16.mxu0 0
  %876 = vmatpush1.bf16.msra.mxu0 0
  %877 = vmatprep.subr.bf16.mxu0 0
  %878 = vmatpush1.bf16.msra.mxu0 0
  %879 = vmatprep.subr.bf16.mxu0 0
  %880 = vmatpush1.bf16.msra.mxu0 %v861
  %881 = vmatprep.subr.bf16.mxu0 0
  %882 = vmatpush1.bf16.msra.mxu0 %v860
  %883 = vmatprep.subr.bf16.mxu0 0
  %884 = vmatpush2.bf16.msra.mxu0 0
  %885 = vmatprep.subr.bf16.mxu0 0
  %886 = vmatpush2.bf16.msra.mxu0 0
  %887 = vmatprep.subr.bf16.mxu0 0
  %888 = vmatpush2.bf16.msra.mxu0 0
  %889 = vmatprep.subr.bf16.mxu0 0
  %890 = vmatpush2.bf16.msra.mxu0 0
  %891 = vmatprep.subr.bf16.mxu0 0
  %892 = vmatpush2.bf16.msra.mxu0 0
  %893 = vmatprep.subr.bf16.mxu0 0
  %894 = vmatpush2.bf16.msra.mxu0 0
  %895 = vmatprep.subr.bf16.mxu0 0
  %896 = vmatpush2.bf16.msra.mxu0 0
  %897 = vmatprep.subr.bf16.mxu0 0
  %898 = vmatpush2.bf16.msra.mxu0 0
  %899 = vmatprep.mubr.bf16.mxu0 0
  %900 = vmatmul.mubr.bf16.gmra.mxu0 %v865
  %v901 = vpop.f32.mrf.mxu0
  %v902 = vadd.f32 %v850, %v901
  %v903 = vpop.f32.mrf.mxu0
  %v904 = vpop.f32.mrf.mxu0
  %v905 = vadd.f32 %v850, %v904
  %v906 = vpop.f32.mrf.mxu0
  %907 = vdwg.mxu0
  %v908 = vmul.f32 %v902, 0.5
  %v909 = vmul.f32 %v905, 0.5
  %v910 = vmul.f32 %v902, 0.044715
  %v911 = vmul.f32 %v905, 0.044715
  %v912 = vmul.f32 %v910, %v902
  %v913 = vmul.f32 %v911, %v905
  %v914 = vmul.f32 %v912, %v902
  %v915 = vmul.f32 %v913, %v905
  %v916 = vadd.f32 %v902, %v914
  %v917 = vadd.f32 %v905, %v915
  %v918 = vmul.f32 %v916, 0.7978846
  %v919 = vmul.f32 %v917, 0.7978846
  %v920 = vtanh.pop %v918
  %v921 = vtanh.pop %v919
  %v922 = vadd.f32 %v920, 1.0
  %v923 = vadd.f32 %v921, 1.0
  %v924 = vmul.f32 %v908, %v922
  %v925 = vmul.f32 %v909, %v923
  %v926 = vpack.c.bf16 %v925, %v924
  %v927 = vld [vmem:[%s10] sm:$0xf]
  %v928 = vld [vmem:[%s10 + $0x4] sm:$0xf]
  %v929 = vld [vmem:[%s10 + $0x8] sm:$0xf]
  %v930 = vld [vmem:[%s10 + $0xc] sm:$0xf]
  %v931 = vld [vmem:[%s10 + $0x10] sm:$0xf]
  %v932 = vld [vmem:[%s10 + $0x14] sm:$0xf]
  %v933 = vld [vmem:[%s10 + $0x18] sm:$0xf]
  %v934 = vld [vmem:[%s10 + $0x1c] sm:$0xf]
  %v935 = vld [vmem:[%s10 + $0x20] sm:$0xf]
  %v936 = vld [vmem:[%s10 + $0x24] sm:$0xf]
  %v937 = vld [vmem:[%s10 + $0x28] sm:$0xf]
  %v938 = vld [vmem:[%s10 + $0x2c] sm:$0xf]
  %v939 = vld [vmem:[%s10 + $0x30] sm:$0xf]
  %v940 = vld [vmem:[%s10 + $0x34] sm:$0xf]
  %v941 = vld [vmem:[%s10 + $0x38] sm:$0xf]
  %v942 = vld [vmem:[%s10 + $0x3c] sm:$0xf]
  %v943 = vld [vmem:[%s11] sm:$0x1]
  %v945 = vlaneseq
  %v946 = vshrl.u32 %v945, 7
  %v947 = vsub.s32 0, %v946
  %v948 = vrot.slane %v943, %v947
  %v966 = vunpack.c.l.b16 %v927
  %v967 = vunpack.c.l.b16 %v928
  %v968 = vunpack.c.l.b16 %v929
  %v969 = vunpack.c.l.b16 %v930
  %v970 = vunpack.c.l.b16 %v931
  %v971 = vunpack.c.l.b16 %v932
  %v972 = vunpack.c.l.b16 %v933
  %v973 = vunpack.c.l.b16 %v934
  %v974 = vunpack.c.l.b16 %v935
  %v975 = vunpack.c.l.b16 %v936
  %v976 = vunpack.c.l.b16 %v937
  %v977 = vunpack.c.l.b16 %v938
  %v978 = vunpack.c.l.b16 %v939
  %v979 = vunpack.c.l.b16 %v940
  %v980 = vunpack.c.l.b16 %v941
  %v981 = vunpack.c.l.b16 %v942
  %v982 = vpack.c.b16 %v967, %v966
  %v983 = vpack.c.b16 %v969, %v968
  %v984 = vpack.c.b16 %v971, %v970
  %v985 = vpack.c.b16 %v973, %v972
  %v986 = vpack.c.b16 %v975, %v974
  %v987 = vpack.c.b16 %v977, %v976
  %v988 = vpack.c.b16 %v979, %v978
  %v989 = vpack.c.b16 %v981, %v980
  %998 = vmatprep.subr.bf16.mxu0 0
  %999 = vmatpush1.bf16.msra.mxu0 %v989
  %1000 = vmatprep.subr.bf16.mxu0 0
  %1001 = vmatpush1.bf16.msra.mxu0 %v988
  %1002 = vmatprep.subr.bf16.mxu0 0
  %1003 = vmatpush1.bf16.msra.mxu0 %v987
  %1004 = vmatprep.subr.bf16.mxu0 0
  %1005 = vmatpush1.bf16.msra.mxu0 %v986
  %1006 = vmatprep.subr.bf16.mxu0 0
  %1007 = vmatpush1.bf16.msra.mxu0 %v985
  %1008 = vmatprep.subr.bf16.mxu0 0
  %1009 = vmatpush1.bf16.msra.mxu0 %v984
  %1010 = vmatprep.subr.bf16.mxu0 0
  %1011 = vmatpush1.bf16.msra.mxu0 %v983
  %1012 = vmatprep.subr.bf16.mxu0 0
  %1013 = vmatpush1.bf16.msra.mxu0 %v982
  %1014 = vmatprep.subr.bf16.mxu0 0
  %1015 = vmatpush2.bf16.msra.mxu0 0
  %1016 = vmatprep.subr.bf16.mxu0 0
  %1017 = vmatpush2.bf16.msra.mxu0 0
  %1018 = vmatprep.subr.bf16.mxu0 0
  %1019 = vmatpush2.bf16.msra.mxu0 0
  %1020 = vmatprep.subr.bf16.mxu0 0
  %1021 = vmatpush2.bf16.msra.mxu0 0
  %1022 = vmatprep.subr.bf16.mxu0 0
  %1023 = vmatpush2.bf16.msra.mxu0 0
  %1024 = vmatprep.subr.bf16.mxu0 0
  %1025 = vmatpush2.bf16.msra.mxu0 0
  %1026 = vmatprep.subr.bf16.mxu0 0
  %1027 = vmatpush2.bf16.msra.mxu0 0
  %1028 = vmatprep.subr.bf16.mxu0 0
  %1029 = vmatpush2.bf16.msra.mxu0 0
  %1030 = vmatprep.mubr.bf16.mxu0 0
  %1031 = vmatmul.mubr.bf16.gmra.mxu0 %v926
  %v1032 = vpop.f32.mrf.mxu0
  %v1033 = vadd.f32 %v948, %v1032
  %v1034 = vpop.f32.mrf.mxu0
  %v1035 = vpop.f32.mrf.mxu0
  %v1036 = vadd.f32 %v948, %v1035
  %v1037 = vpop.f32.mrf.mxu0
  %1038 = vdwg.mxu0
  %v1039 = vadd.f32 %v838, %v1033
  %v1040 = vadd.f32 %v839, %v1036
  %v1041 = vld [vmem:[%s12] sm:$0x1]
  %v1042 = vld [vmem:[%s13] sm:$0x1]
  %v1043 = vsel %vm97, %v1039, 0.0
  %1044 = vadd.xlane.f32.xlu0 %v1043
  %v1045 = vpop.xlane.xlu0 %1044
  %v1046 = vsel %vm97, %v1040, 0.0
  %1047 = vadd.xlane.f32.xlu0 %v1046
  %v1048 = vpop.xlane.xlu0 %1047
  %v1049 = vmul.f32 %v1045, %v803
  %v1050 = vmul.f32 %v1048, %v803
  %v1051 = vsub.f32 %v1039, %v1049
  %v1052 = vsub.f32 %v1040, %v1050
  %v1053 = vmul.f32 %v1051, %v1051
  %v1054 = vmul.f32 %v1052, %v1052
  %v1055 = vsel %vm97, %v1053, 0.0
  %1056 = vadd.xlane.f32.xlu0 %v1055
  %v1057 = vpop.xlane.xlu0 %1056
  %v1058 = vsel %vm97, %v1054, 0.0
  %1059 = vadd.xlane.f32.xlu0 %v1058
  %v1060 = vpop.xlane.xlu0 %1059
  %v1061 = vmul.f32 %v1057, %v803
  %v1062 = vmul.f32 %v1060, %v803
  %v1063 = vadd.f32 %v1061, 1e-05
  %v1064 = vadd.f32 %v1062, 1e-05
  %v1065 = vrsqrt.pop %v1063
  %v1066 = vrsqrt.pop %v1064
  %v1067 = vmul.f32 %v1051, %v1065
  %v1068 = vmul.f32 %v1052, %v1066
  %v1070 = vlaneseq
  %v1071 = vshrl.u32 %v1070, 7
  %v1072 = vsub.s32 0, %v1071
  %v1073 = vrot.slane %v1041, %v1072
  %v1075 = vmul.f32 %v1067, %v1073
  %v1076 = vmul.f32 %v1068, %v1073
  %v1078 = vlaneseq
  %v1079 = vshrl.u32 %v1078, 7
  %v1080 = vsub.s32 0, %v1079
  %v1081 = vrot.slane %v1042, %v1080
  %v1083 = vadd.f32 %v1075, %v1081
  %v1084 = vadd.f32 %v1076, %v1081
  %v1085 = vpack.c.bf16 %v1084, %v1083
  %s1086 = scalar_lea.vmem %s2, 16
  %v1087 = vld [vmem:[%s1086] sm:$0xf]
  %v1088 = vld [vmem:[%s1086 + $0x4] sm:$0xf]
  %v1089 = vld [vmem:[%s1086 + $0x8] sm:$0xf]
  %v1090 = vld [vmem:[%s1086 + $0xc] sm:$0xf]
  %s1091 = scalar_lea.vmem %s3, 1
  %v1092 = vld [vmem:[%s1091] sm:$0x1]
  %v1094 = vlaneseq
  %v1095 = vshrl.u32 %v1094, 7
  %v1096 = vsub.s32 0, %v1095
  %v1097 = vrot.slane %v1092, %v1096
  %v1103 = vunpack.c.l.b16 %v1087
  %v1104 = vunpack.c.l.b16 %v1088
  %v1105 = vunpack.c.l.b16 %v1089
  %v1106 = vunpack.c.l.b16 %v1090
  %v1107 = vpack.c.b16 %v1104, %v1103
  %v1108 = vpack.c.b16 %v1106, %v1105
  %v1112 = vsel %vm97, %v1085, 0
  %1114 = vmatprep.subr.bf16.mxu0 0
  %1115 = vmatpush1.bf16.msra.mxu0 0
  %1116 = vmatprep.subr.bf16.mxu0 0
  %1117 = vmatpush1.bf16.msra.mxu0 0
  %1118 = vmatprep.subr.bf16.mxu0 0
  %1119 = vmatpush1.bf16.msra.mxu0 0
  %1120 = vmatprep.subr.bf16.mxu0 0
  %1121 = vmatpush1.bf16.msra.mxu0 0
  %1122 = vmatprep.subr.bf16.mxu0 0
  %1123 = vmatpush1.bf16.msra.mxu0 0
  %1124 = vmatprep.subr.bf16.mxu0 0
  %1125 = vmatpush1.bf16.msra.mxu0 0
  %1126 = vmatprep.subr.bf16.mxu0 0
  %1127 = vmatpush1.bf16.msra.mxu0 %v1108
  %1128 = vmatprep.subr.bf16.mxu0 0
  %1129 = vmatpush1.bf16.msra.mxu0 %v1107
  %1130 = vmatprep.subr.bf16.mxu0 0
  %1131 = vmatpush2.bf16.msra.mxu0 0
  %1132 = vmatprep.subr.bf16.mxu0 0
  %1133 = vmatpush2.bf16.msra.mxu0 0
  %1134 = vmatprep.subr.bf16.mxu0 0
  %1135 = vmatpush2.bf16.msra.mxu0 0
  %1136 = vmatprep.subr.bf16.mxu0 0
  %1137 = vmatpush2.bf16.msra.mxu0 0
  %1138 = vmatprep.subr.bf16.mxu0 0
  %1139 = vmatpush2.bf16.msra.mxu0 0
  %1140 = vmatprep.subr.bf16.mxu0 0
  %1141 = vmatpush2.bf16.msra.mxu0 0
  %1142 = vmatprep.subr.bf16.mxu0 0
  %1143 = vmatpush2.bf16.msra.mxu0 0
  %1144 = vmatprep.subr.bf16.mxu0 0
  %1145 = vmatpush2.bf16.msra.mxu0 0
  %1146 = vmatprep.mubr.bf16.mxu0 0
  %1147 = vmatmul.mubr.bf16.gmra.mxu0 %v1112
  %v1148 = vpop.f32.mrf.mxu0
  %v1149 = vadd.f32 %v1097, %v1148
  %v1150 = vpop.f32.mrf.mxu0
  %v1151 = vpop.f32.mrf.mxu0
  %v1152 = vadd.f32 %v1097, %v1151
  %v1153 = vpop.f32.mrf.mxu0
  %1154 = vdwg.mxu0
  %v1155 = vpack.c.bf16 %v1152, %v1149
  %s1156 = scalar_lea.vmem %s4, 16
  %v1157 = vld [vmem:[%s1156] sm:$0xf]
  %v1158 = vld [vmem:[%s1156 + $0x4] sm:$0xf]
  %v1159 = vld [vmem:[%s1156 + $0x8] sm:$0xf]
  %v1160 = vld [vmem:[%s1156 + $0xc] sm:$0xf]
  %1162 = vrot.lane.b32.xlu0 %v1155, 96
  %v1163 = vpop.permute.xlu0 %1162
  %v1165 = vsel %vm150, %v1155, 0
  %v1168 = vsel %vm150, %v1163, 0
  %1170 = vmatprep.subr.bf16.mxu0 0
  %1171 = vmatpush1.bf16.xpose.msra.mxu0 0
  %1172 = vmatprep.subr.bf16.mxu0 0
  %1173 = vmatpush1.bf16.xpose.msra.mxu0 0
  %1174 = vmatprep.subr.bf16.mxu0 0
  %1175 = vmatpush1.bf16.xpose.msra.mxu0 0
  %1176 = vmatprep.subr.bf16.mxu0 0
  %1177 = vmatpush1.bf16.xpose.msra.mxu0 0
  %1178 = vmatprep.subr.bf16.mxu0 0
  %1179 = vmatpush1.bf16.xpose.msra.mxu0 0
  %1180 = vmatprep.subr.bf16.mxu0 0
  %1181 = vmatpush1.bf16.xpose.msra.mxu0 0
  %1182 = vmatprep.subr.bf16.mxu0 0
  %1183 = vmatpush1.bf16.xpose.msra.mxu0 0
  %1184 = vmatprep.subr.bf16.mxu0 0
  %1185 = vmatpush1.bf16.xpose.msra.mxu0 %v1168
  %1186 = vmatprep.subr.bf16.mxu0 0
  %1187 = vmatpush2.bf16.xpose.msra.mxu0 0
  %1188 = vmatprep.subr.bf16.mxu0 0
  %1189 = vmatpush2.bf16.xpose.msra.mxu0 0
  %1190 = vmatprep.subr.bf16.mxu0 0
  %1191 = vmatpush2.bf16.xpose.msra.mxu0 0
  %1192 = vmatprep.subr.bf16.mxu0 0
  %1193 = vmatpush2.bf16.xpose.msra.mxu0 0
  %1194 = vmatprep.subr.bf16.mxu0 0
  %1195 = vmatpush2.bf16.xpose.msra.mxu0 0
  %1196 = vmatprep.subr.bf16.mxu0 0
  %1197 = vmatpush2.bf16.xpose.msra.mxu0 0
  %1198 = vmatprep.subr.bf16.mxu0 0
  %1199 = vmatpush2.bf16.xpose.msra.mxu0 0
  %1200 = vmatprep.subr.bf16.mxu0 0
  %1201 = vmatpush2.bf16.xpose.msra.mxu0 0
  %1202 = vmatprep.mubr.bf16.mxu0 0
  %1203 = vmatmul.mubr.bf16.gmra.mxu0 %v1165
  %v1204 = vpop.f32.mrf.mxu0
  %v1205 = vadd.f32 0.0, %v1204
  %v1206 = vpop.f32.mrf.mxu0
  %v1207 = vpop.f32.mrf.mxu0
  %v1208 = vpop.f32.mrf.mxu0
  %1209 = vdwg.mxu0
  %v1210 = vmul.f32 %v1205, 0.25
  %v1211 = vadd.f32 %v1210, %v68
  %v1212 = vsel %vm199, %v1211, -inf
  %1213 = vmax.xlane.f32.xlu0 %v1212
  %v1214 = vpop.xlane.xlu0 %1213
  %v1215 = vsub.f32 %v1211, %v1214
  %v1216 = vmul.f32 %v1215, 1.442695
  %v1217 = vpow.pop %v1216
  %v1218 = vsel %vm199, %v1217, 0.0
  %1219 = vadd.xlane.f32.xlu0 %v1218
  %v1220 = vpop.xlane.xlu0 %1219
  %v1221 = vrcp.pop %v1220
  %v1222 = vmul.f32 %v1217, %v1221
  %v1223 = vpack.c.bf16 %v1222, %v1222
  %1224 = vrot.lane.b32.xlu0 %v1155, 64
  %v1225 = vpop.permute.xlu0 %1224
  %v1227 = vsel %vm199, %v1223, 0
  %v1230 = vsel %vm217, %v1225, 0
  %1232 = vmatprep.subr.bf16.mxu0 0
  %1233 = vmatpush1.bf16.msra.mxu0 0
  %1234 = vmatprep.subr.bf16.mxu0 0
  %1235 = vmatpush1.bf16.msra.mxu0 0
  %1236 = vmatprep.subr.bf16.mxu0 0
  %1237 = vmatpush1.bf16.msra.mxu0 0
  %1238 = vmatprep.subr.bf16.mxu0 0
  %1239 = vmatpush1.bf16.msra.mxu0 0
  %1240 = vmatprep.subr.bf16.mxu0 0
  %1241 = vmatpush1.bf16.msra.mxu0 0
  %1242 = vmatprep.subr.bf16.mxu0 0
  %1243 = vmatpush1.bf16.msra.mxu0 0
  %1244 = vmatprep.subr.bf16.mxu0 0
  %1245 = vmatpush1.bf16.msra.mxu0 0
  %1246 = vmatprep.subr.bf16.mxu0 0
  %1247 = vmatpush1.bf16.msra.mxu0 %v1230
  %1248 = vmatprep.subr.bf16.mxu0 0
  %1249 = vmatpush2.bf16.msra.mxu0 0
  %1250 = vmatprep.subr.bf16.mxu0 0
  %1251 = vmatpush2.bf16.msra.mxu0 0
  %1252 = vmatprep.subr.bf16.mxu0 0
  %1253 = vmatpush2.bf16.msra.mxu0 0
  %1254 = vmatprep.subr.bf16.mxu0 0
  %1255 = vmatpush2.bf16.msra.mxu0 0
  %1256 = vmatprep.subr.bf16.mxu0 0
  %1257 = vmatpush2.bf16.msra.mxu0 0
  %1258 = vmatprep.subr.bf16.mxu0 0
  %1259 = vmatpush2.bf16.msra.mxu0 0
  %1260 = vmatprep.subr.bf16.mxu0 0
  %1261 = vmatpush2.bf16.msra.mxu0 0
  %1262 = vmatprep.subr.bf16.mxu0 0
  %1263 = vmatpush2.bf16.msra.mxu0 0
  %1264 = vmatprep.mubr.bf16.mxu0 0
  %1265 = vmatmul.mubr.bf16.gmra.mxu0 %v1227
  %v1266 = vpop.f32.mrf.mxu0
  %v1267 = vadd.f32 0.0, %v1266
  %v1268 = vpop.f32.mrf.mxu0
  %v1269 = vpop.f32.mrf.mxu0
  %v1270 = vpop.f32.mrf.mxu0
  %1271 = vdwg.mxu0
  %v1272 = vpack.c.bf16 %v1267, %v1267
  %1273 = vrot.lane.b32.xlu0 %v1155, 112
  %v1274 = vpop.permute.xlu0 %1273
  %1275 = vrot.lane.b32.xlu0 %v1155, 80
  %v1276 = vpop.permute.xlu0 %1275
  %v1278 = vsel %vm150, %v1274, 0
  %v1281 = vsel %vm150, %v1276, 0
  %1283 = vmatprep.subr.bf16.mxu0 0
  %1284 = vmatpush1.bf16.xpose.msra.mxu0 0
  %1285 = vmatprep.subr.bf16.mxu0 0
  %1286 = vmatpush1.bf16.xpose.msra.mxu0 0
  %1287 = vmatprep.subr.bf16.mxu0 0
  %1288 = vmatpush1.bf16.xpose.msra.mxu0 0
  %1289 = vmatprep.subr.bf16.mxu0 0
  %1290 = vmatpush1.bf16.xpose.msra.mxu0 0
  %1291 = vmatprep.subr.bf16.mxu0 0
  %1292 = vmatpush1.bf16.xpose.msra.mxu0 0
  %1293 = vmatprep.subr.bf16.mxu0 0
  %1294 = vmatpush1.bf16.xpose.msra.mxu0 0
  %1295 = vmatprep.subr.bf16.mxu0 0
  %1296 = vmatpush1.bf16.xpose.msra.mxu0 0
  %1297 = vmatprep.subr.bf16.mxu0 0
  %1298 = vmatpush1.bf16.xpose.msra.mxu0 %v1281
  %1299 = vmatprep.subr.bf16.mxu0 0
  %1300 = vmatpush2.bf16.xpose.msra.mxu0 0
  %1301 = vmatprep.subr.bf16.mxu0 0
  %1302 = vmatpush2.bf16.xpose.msra.mxu0 0
  %1303 = vmatprep.subr.bf16.mxu0 0
  %1304 = vmatpush2.bf16.xpose.msra.mxu0 0
  %1305 = vmatprep.subr.bf16.mxu0 0
  %1306 = vmatpush2.bf16.xpose.msra.mxu0 0
  %1307 = vmatprep.subr.bf16.mxu0 0
  %1308 = vmatpush2.bf16.xpose.msra.mxu0 0
  %1309 = vmatprep.subr.bf16.mxu0 0
  %1310 = vmatpush2.bf16.xpose.msra.mxu0 0
  %1311 = vmatprep.subr.bf16.mxu0 0
  %1312 = vmatpush2.bf16.xpose.msra.mxu0 0
  %1313 = vmatprep.subr.bf16.mxu0 0
  %1314 = vmatpush2.bf16.xpose.msra.mxu0 0
  %1315 = vmatprep.mubr.bf16.mxu0 0
  %1316 = vmatmul.mubr.bf16.gmra.mxu0 %v1278
  %v1317 = vpop.f32.mrf.mxu0
  %v1318 = vadd.f32 0.0, %v1317
  %v1319 = vpop.f32.mrf.mxu0
  %v1320 = vpop.f32.mrf.mxu0
  %v1321 = vpop.f32.mrf.mxu0
  %1322 = vdwg.mxu0
  %v1323 = vmul.f32 %v1318, 0.25
  %v1324 = vadd.f32 %v1323, %v68
  %v1325 = vsel %vm199, %v1324, -inf
  %1326 = vmax.xlane.f32.xlu0 %v1325
  %v1327 = vpop.xlane.xlu0 %1326
  %v1328 = vsub.f32 %v1324, %v1327
  %v1329 = vmul.f32 %v1328, 1.442695
  %v1330 = vpow.pop %v1329
  %v1331 = vsel %vm199, %v1330, 0.0
  %1332 = vadd.xlane.f32.xlu0 %v1331
  %v1333 = vpop.xlane.xlu0 %1332
  %v1334 = vrcp.pop %v1333
  %v1335 = vmul.f32 %v1330, %v1334
  %v1336 = vpack.c.bf16 %v1335, %v1335
  %1337 = vrot.lane.b32.xlu0 %v1155, 48
  %v1338 = vpop.permute.xlu0 %1337
  %v1340 = vsel %vm199, %v1336, 0
  %v1343 = vsel %vm217, %v1338, 0
  %1345 = vmatprep.subr.bf16.mxu0 0
  %1346 = vmatpush1.bf16.msra.mxu0 0
  %1347 = vmatprep.subr.bf16.mxu0 0
  %1348 = vmatpush1.bf16.msra.mxu0 0
  %1349 = vmatprep.subr.bf16.mxu0 0
  %1350 = vmatpush1.bf16.msra.mxu0 0
  %1351 = vmatprep.subr.bf16.mxu0 0
  %1352 = vmatpush1.bf16.msra.mxu0 0
  %1353 = vmatprep.subr.bf16.mxu0 0
  %1354 = vmatpush1.bf16.msra.mxu0 0
  %1355 = vmatprep.subr.bf16.mxu0 0
  %1356 = vmatpush1.bf16.msra.mxu0 0
  %1357 = vmatprep.subr.bf16.mxu0 0
  %1358 = vmatpush1.bf16.msra.mxu0 0
  %1359 = vmatprep.subr.bf16.mxu0 0
  %1360 = vmatpush1.bf16.msra.mxu0 %v1343
  %1361 = vmatprep.subr.bf16.mxu0 0
  %1362 = vmatpush2.bf16.msra.mxu0 0
  %1363 = vmatprep.subr.bf16.mxu0 0
  %1364 = vmatpush2.bf16.msra.mxu0 0
  %1365 = vmatprep.subr.bf16.mxu0 0
  %1366 = vmatpush2.bf16.msra.mxu0 0
  %1367 = vmatprep.subr.bf16.mxu0 0
  %1368 = vmatpush2.bf16.msra.mxu0 0
  %1369 = vmatprep.subr.bf16.mxu0 0
  %1370 = vmatpush2.bf16.msra.mxu0 0
  %1371 = vmatprep.subr.bf16.mxu0 0
  %1372 = vmatpush2.bf16.msra.mxu0 0
  %1373 = vmatprep.subr.bf16.mxu0 0
  %1374 = vmatpush2.bf16.msra.mxu0 0
  %1375 = vmatprep.subr.bf16.mxu0 0
  %1376 = vmatpush2.bf16.msra.mxu0 0
  %1377 = vmatprep.mubr.bf16.mxu0 0
  %1378 = vmatmul.mubr.bf16.gmra.mxu0 %v1340
  %v1379 = vpop.f32.mrf.mxu0
  %v1380 = vadd.f32 0.0, %v1379
  %v1381 = vpop.f32.mrf.mxu0
  %v1382 = vpop.f32.mrf.mxu0
  %v1383 = vpop.f32.mrf.mxu0
  %1384 = vdwg.mxu0
  %v1385 = vpack.c.bf16 %v1380, %v1380
  %v1388 = vunpack.c.l.b16 %v1159
  %v1389 = vunpack.c.l.b16 %v1160
  %v1390 = vpack.c.b16 %v1389, %v1388
  %v1393 = vsel %vm150, %v1385, 0
  %1395 = vmatprep.subr.bf16.mxu0 0
  %1396 = vmatpush1.bf16.msra.mxu0 0
  %1397 = vmatprep.subr.bf16.mxu0 0
  %1398 = vmatpush1.bf16.msra.mxu0 0
  %1399 = vmatprep.subr.bf16.mxu0 0
  %1400 = vmatpush1.bf16.msra.mxu0 0
  %1401 = vmatprep.subr.bf16.mxu0 0
  %1402 = vmatpush1.bf16.msra.mxu0 0
  %1403 = vmatprep.subr.bf16.mxu0 0
  %1404 = vmatpush1.bf16.msra.mxu0 0
  %1405 = vmatprep.subr.bf16.mxu0 0
  %1406 = vmatpush1.bf16.msra.mxu0 0
  %1407 = vmatprep.subr.bf16.mxu0 0
  %1408 = vmatpush1.bf16.msra.mxu0 0
  %1409 = vmatprep.subr.bf16.mxu0 0
  %1410 = vmatpush1.bf16.msra.mxu0 %v1390
  %1411 = vmatprep.subr.bf16.mxu0 0
  %1412 = vmatpush2.bf16.msra.mxu0 0
  %1413 = vmatprep.subr.bf16.mxu0 0
  %1414 = vmatpush2.bf16.msra.mxu0 0
  %1415 = vmatprep.subr.bf16.mxu0 0
  %1416 = vmatpush2.bf16.msra.mxu0 0
  %1417 = vmatprep.subr.bf16.mxu0 0
  %1418 = vmatpush2.bf16.msra.mxu0 0
  %1419 = vmatprep.subr.bf16.mxu0 0
  %1420 = vmatpush2.bf16.msra.mxu0 0
  %1421 = vmatprep.subr.bf16.mxu0 0
  %1422 = vmatpush2.bf16.msra.mxu0 0
  %1423 = vmatprep.subr.bf16.mxu0 0
  %1424 = vmatpush2.bf16.msra.mxu0 0
  %1425 = vmatprep.subr.bf16.mxu0 0
  %1426 = vmatpush2.bf16.msra.mxu0 0
  %1427 = vmatprep.mubr.bf16.mxu0 0
  %1428 = vmatmul.mubr.bf16.gmra.mxu0 %v1393
  %v1429 = vpop.f32.mrf.mxu0
  %v1430 = vadd.f32 0.0, %v1429
  %v1431 = vpop.f32.mrf.mxu0
  %v1432 = vpop.f32.mrf.mxu0
  %v1433 = vpop.f32.mrf.mxu0
  %1434 = vdwg.mxu0
  %v1437 = vunpack.c.l.b16 %v1157
  %v1438 = vunpack.c.l.b16 %v1158
  %v1439 = vpack.c.b16 %v1438, %v1437
  %v1442 = vsel %vm150, %v1272, 0
  %1444 = vmatprep.subr.bf16.mxu0 0
  %1445 = vmatpush1.bf16.msra.mxu0 0
  %1446 = vmatprep.subr.bf16.mxu0 0
  %1447 = vmatpush1.bf16.msra.mxu0 0
  %1448 = vmatprep.subr.bf16.mxu0 0
  %1449 = vmatpush1.bf16.msra.mxu0 0
  %1450 = vmatprep.subr.bf16.mxu0 0
  %1451 = vmatpush1.bf16.msra.mxu0 0
  %1452 = vmatprep.subr.bf16.mxu0 0
  %1453 = vmatpush1.bf16.msra.mxu0 0
  %1454 = vmatprep.subr.bf16.mxu0 0
  %1455 = vmatpush1.bf16.msra.mxu0 0
  %1456 = vmatprep.subr.bf16.mxu0 0
  %1457 = vmatpush1.bf16.msra.mxu0 0
  %1458 = vmatprep.subr.bf16.mxu0 0
  %1459 = vmatpush1.bf16.msra.mxu0 %v1439
  %1460 = vmatprep.subr.bf16.mxu0 0
  %1461 = vmatpush2.bf16.msra.mxu0 0
  %1462 = vmatprep.subr.bf16.mxu0 0
  %1463 = vmatpush2.bf16.msra.mxu0 0
  %1464 = vmatprep.subr.bf16.mxu0 0
  %1465 = vmatpush2.bf16.msra.mxu0 0
  %1466 = vmatprep.subr.bf16.mxu0 0
  %1467 = vmatpush2.bf16.msra.mxu0 0
  %1468 = vmatprep.subr.bf16.mxu0 0
  %1469 = vmatpush2.bf16.msra.mxu0 0
  %1470 = vmatprep.subr.bf16.mxu0 0
  %1471 = vmatpush2.bf16.msra.mxu0 0
  %1472 = vmatprep.subr.bf16.mxu0 0
  %1473 = vmatpush2.bf16.msra.mxu0 0
  %1474 = vmatprep.subr.bf16.mxu0 0
  %1475 = vmatpush2.bf16.msra.mxu0 0
  %1476 = vmatprep.mubr.bf16.mxu0 0
  %1477 = vmatmul.mubr.bf16.gmra.mxu0 %v1442
  %v1478 = vpop.f32.mrf.mxu0
  %v1479 = vadd.f32 %v1430, %v1478
  %v1480 = vpop.f32.mrf.mxu0
  %v1481 = vpop.f32.mrf.mxu0
  %v1482 = vpop.f32.mrf.mxu0
  %1483 = vdwg.mxu0
  %v1484 = vrot.slane %v1155, 4
  %1485 = vrot.lane.b32.xlu0 %v1484, 96
  %v1486 = vpop.permute.xlu0 %1485
  %v1488 = vsel %vm150, %v1484, 0
  %v1491 = vsel %vm150, %v1486, 0
  %1493 = vmatprep.subr.bf16.mxu0 0
  %1494 = vmatpush1.bf16.xpose.msra.mxu0 0
  %1495 = vmatprep.subr.bf16.mxu0 0
  %1496 = vmatpush1.bf16.xpose.msra.mxu0 0
  %1497 = vmatprep.subr.bf16.mxu0 0
  %1498 = vmatpush1.bf16.xpose.msra.mxu0 0
  %1499 = vmatprep.subr.bf16.mxu0 0
  %1500 = vmatpush1.bf16.xpose.msra.mxu0 0
  %1501 = vmatprep.subr.bf16.mxu0 0
  %1502 = vmatpush1.bf16.xpose.msra.mxu0 0
  %1503 = vmatprep.subr.bf16.mxu0 0
  %1504 = vmatpush1.bf16.xpose.msra.mxu0 0
  %1505 = vmatprep.subr.bf16.mxu0 0
  %1506 = vmatpush1.bf16.xpose.msra.mxu0 0
  %1507 = vmatprep.subr.bf16.mxu0 0
  %1508 = vmatpush1.bf16.xpose.msra.mxu0 %v1491
  %1509 = vmatprep.subr.bf16.mxu0 0
  %1510 = vmatpush2.bf16.xpose.msra.mxu0 0
  %1511 = vmatprep.subr.bf16.mxu0 0
  %1512 = vmatpush2.bf16.xpose.msra.mxu0 0
  %1513 = vmatprep.subr.bf16.mxu0 0
  %1514 = vmatpush2.bf16.xpose.msra.mxu0 0
  %1515 = vmatprep.subr.bf16.mxu0 0
  %1516 = vmatpush2.bf16.xpose.msra.mxu0 0
  %1517 = vmatprep.subr.bf16.mxu0 0
  %1518 = vmatpush2.bf16.xpose.msra.mxu0 0
  %1519 = vmatprep.subr.bf16.mxu0 0
  %1520 = vmatpush2.bf16.xpose.msra.mxu0 0
  %1521 = vmatprep.subr.bf16.mxu0 0
  %1522 = vmatpush2.bf16.xpose.msra.mxu0 0
  %1523 = vmatprep.subr.bf16.mxu0 0
  %1524 = vmatpush2.bf16.xpose.msra.mxu0 0
  %1525 = vmatprep.mubr.bf16.mxu0 0
  %1526 = vmatmul.mubr.bf16.gmra.mxu0 %v1488
  %v1527 = vpop.f32.mrf.mxu0
  %v1528 = vadd.f32 0.0, %v1527
  %v1529 = vpop.f32.mrf.mxu0
  %v1530 = vpop.f32.mrf.mxu0
  %v1531 = vpop.f32.mrf.mxu0
  %1532 = vdwg.mxu0
  %v1533 = vmul.f32 %v1528, 0.25
  %v1534 = vadd.f32 %v1533, %v72
  %v1535 = vsel %vm199, %v1534, -inf
  %1536 = vmax.xlane.f32.xlu0 %v1535
  %v1537 = vpop.xlane.xlu0 %1536
  %v1538 = vsub.f32 %v1534, %v1537
  %v1539 = vmul.f32 %v1538, 1.442695
  %v1540 = vpow.pop %v1539
  %v1541 = vsel %vm199, %v1540, 0.0
  %1542 = vadd.xlane.f32.xlu0 %v1541
  %v1543 = vpop.xlane.xlu0 %1542
  %v1544 = vrcp.pop %v1543
  %v1545 = vmul.f32 %v1540, %v1544
  %v1546 = vpack.c.bf16 %v1545, %v1545
  %1547 = vrot.lane.b32.xlu0 %v1484, 64
  %v1548 = vpop.permute.xlu0 %1547
  %v1550 = vsel %vm199, %v1546, 0
  %v1553 = vsel %vm217, %v1548, 0
  %1555 = vmatprep.subr.bf16.mxu0 0
  %1556 = vmatpush1.bf16.msra.mxu0 0
  %1557 = vmatprep.subr.bf16.mxu0 0
  %1558 = vmatpush1.bf16.msra.mxu0 0
  %1559 = vmatprep.subr.bf16.mxu0 0
  %1560 = vmatpush1.bf16.msra.mxu0 0
  %1561 = vmatprep.subr.bf16.mxu0 0
  %1562 = vmatpush1.bf16.msra.mxu0 0
  %1563 = vmatprep.subr.bf16.mxu0 0
  %1564 = vmatpush1.bf16.msra.mxu0 0
  %1565 = vmatprep.subr.bf16.mxu0 0
  %1566 = vmatpush1.bf16.msra.mxu0 0
  %1567 = vmatprep.subr.bf16.mxu0 0
  %1568 = vmatpush1.bf16.msra.mxu0 0
  %1569 = vmatprep.subr.bf16.mxu0 0
  %1570 = vmatpush1.bf16.msra.mxu0 %v1553
  %1571 = vmatprep.subr.bf16.mxu0 0
  %1572 = vmatpush2.bf16.msra.mxu0 0
  %1573 = vmatprep.subr.bf16.mxu0 0
  %1574 = vmatpush2.bf16.msra.mxu0 0
  %1575 = vmatprep.subr.bf16.mxu0 0
  %1576 = vmatpush2.bf16.msra.mxu0 0
  %1577 = vmatprep.subr.bf16.mxu0 0
  %1578 = vmatpush2.bf16.msra.mxu0 0
  %1579 = vmatprep.subr.bf16.mxu0 0
  %1580 = vmatpush2.bf16.msra.mxu0 0
  %1581 = vmatprep.subr.bf16.mxu0 0
  %1582 = vmatpush2.bf16.msra.mxu0 0
  %1583 = vmatprep.subr.bf16.mxu0 0
  %1584 = vmatpush2.bf16.msra.mxu0 0
  %1585 = vmatprep.subr.bf16.mxu0 0
  %1586 = vmatpush2.bf16.msra.mxu0 0
  %1587 = vmatprep.mubr.bf16.mxu0 0
  %1588 = vmatmul.mubr.bf16.gmra.mxu0 %v1550
  %v1589 = vpop.f32.mrf.mxu0
  %v1590 = vadd.f32 0.0, %v1589
  %v1591 = vpop.f32.mrf.mxu0
  %v1592 = vpop.f32.mrf.mxu0
  %v1593 = vpop.f32.mrf.mxu0
  %1594 = vdwg.mxu0
  %v1595 = vpack.c.bf16 %v1590, %v1590
  %1596 = vrot.lane.b32.xlu0 %v1484, 112
  %v1597 = vpop.permute.xlu0 %1596
  %1598 = vrot.lane.b32.xlu0 %v1484, 80
  %v1599 = vpop.permute.xlu0 %1598
  %v1601 = vsel %vm150, %v1597, 0
  %v1604 = vsel %vm150, %v1599, 0
  %1606 = vmatprep.subr.bf16.mxu0 0
  %1607 = vmatpush1.bf16.xpose.msra.mxu0 0
  %1608 = vmatprep.subr.bf16.mxu0 0
  %1609 = vmatpush1.bf16.xpose.msra.mxu0 0
  %1610 = vmatprep.subr.bf16.mxu0 0
  %1611 = vmatpush1.bf16.xpose.msra.mxu0 0
  %1612 = vmatprep.subr.bf16.mxu0 0
  %1613 = vmatpush1.bf16.xpose.msra.mxu0 0
  %1614 = vmatprep.subr.bf16.mxu0 0
  %1615 = vmatpush1.bf16.xpose.msra.mxu0 0
  %1616 = vmatprep.subr.bf16.mxu0 0
  %1617 = vmatpush1.bf16.xpose.msra.mxu0 0
  %1618 = vmatprep.subr.bf16.mxu0 0
  %1619 = vmatpush1.bf16.xpose.msra.mxu0 0
  %1620 = vmatprep.subr.bf16.mxu0 0
  %1621 = vmatpush1.bf16.xpose.msra.mxu0 %v1604
  %1622 = vmatprep.subr.bf16.mxu0 0
  %1623 = vmatpush2.bf16.xpose.msra.mxu0 0
  %1624 = vmatprep.subr.bf16.mxu0 0
  %1625 = vmatpush2.bf16.xpose.msra.mxu0 0
  %1626 = vmatprep.subr.bf16.mxu0 0
  %1627 = vmatpush2.bf16.xpose.msra.mxu0 0
  %1628 = vmatprep.subr.bf16.mxu0 0
  %1629 = vmatpush2.bf16.xpose.msra.mxu0 0
  %1630 = vmatprep.subr.bf16.mxu0 0
  %1631 = vmatpush2.bf16.xpose.msra.mxu0 0
  %1632 = vmatprep.subr.bf16.mxu0 0
  %1633 = vmatpush2.bf16.xpose.msra.mxu0 0
  %1634 = vmatprep.subr.bf16.mxu0 0
  %1635 = vmatpush2.bf16.xpose.msra.mxu0 0
  %1636 = vmatprep.subr.bf16.mxu0 0
  %1637 = vmatpush2.bf16.xpose.msra.mxu0 0
  %1638 = vmatprep.mubr.bf16.mxu0 0
  %1639 = vmatmul.mubr.bf16.gmra.mxu0 %v1601
  %v1640 = vpop.f32.mrf.mxu0
  %v1641 = vadd.f32 0.0, %v1640
  %v1642 = vpop.f32.mrf.mxu0
  %v1643 = vpop.f32.mrf.mxu0
  %v1644 = vpop.f32.mrf.mxu0
  %1645 = vdwg.mxu0
  %v1646 = vmul.f32 %v1641, 0.25
  %v1647 = vadd.f32 %v1646, %v72
  %v1648 = vsel %vm199, %v1647, -inf
  %1649 = vmax.xlane.f32.xlu0 %v1648
  %v1650 = vpop.xlane.xlu0 %1649
  %v1651 = vsub.f32 %v1647, %v1650
  %v1652 = vmul.f32 %v1651, 1.442695
  %v1653 = vpow.pop %v1652
  %v1654 = vsel %vm199, %v1653, 0.0
  %1655 = vadd.xlane.f32.xlu0 %v1654
  %v1656 = vpop.xlane.xlu0 %1655
  %v1657 = vrcp.pop %v1656
  %v1658 = vmul.f32 %v1653, %v1657
  %v1659 = vpack.c.bf16 %v1658, %v1658
  %1660 = vrot.lane.b32.xlu0 %v1484, 48
  %v1661 = vpop.permute.xlu0 %1660
  %v1663 = vsel %vm199, %v1659, 0
  %v1666 = vsel %vm217, %v1661, 0
  %1668 = vmatprep.subr.bf16.mxu0 0
  %1669 = vmatpush1.bf16.msra.mxu0 0
  %1670 = vmatprep.subr.bf16.mxu0 0
  %1671 = vmatpush1.bf16.msra.mxu0 0
  %1672 = vmatprep.subr.bf16.mxu0 0
  %1673 = vmatpush1.bf16.msra.mxu0 0
  %1674 = vmatprep.subr.bf16.mxu0 0
  %1675 = vmatpush1.bf16.msra.mxu0 0
  %1676 = vmatprep.subr.bf16.mxu0 0
  %1677 = vmatpush1.bf16.msra.mxu0 0
  %1678 = vmatprep.subr.bf16.mxu0 0
  %1679 = vmatpush1.bf16.msra.mxu0 0
  %1680 = vmatprep.subr.bf16.mxu0 0
  %1681 = vmatpush1.bf16.msra.mxu0 0
  %1682 = vmatprep.subr.bf16.mxu0 0
  %1683 = vmatpush1.bf16.msra.mxu0 %v1666
  %1684 = vmatprep.subr.bf16.mxu0 0
  %1685 = vmatpush2.bf16.msra.mxu0 0
  %1686 = vmatprep.subr.bf16.mxu0 0
  %1687 = vmatpush2.bf16.msra.mxu0 0
  %1688 = vmatprep.subr.bf16.mxu0 0
  %1689 = vmatpush2.bf16.msra.mxu0 0
  %1690 = vmatprep.subr.bf16.mxu0 0
  %1691 = vmatpush2.bf16.msra.mxu0 0
  %1692 = vmatprep.subr.bf16.mxu0 0
  %1693 = vmatpush2.bf16.msra.mxu0 0
  %1694 = vmatprep.subr.bf16.mxu0 0
  %1695 = vmatpush2.bf16.msra.mxu0 0
  %1696 = vmatprep.subr.bf16.mxu0 0
  %1697 = vmatpush2.bf16.msra.mxu0 0
  %1698 = vmatprep.subr.bf16.mxu0 0
  %1699 = vmatpush2.bf16.msra.mxu0 0
  %1700 = vmatprep.mubr.bf16.mxu0 0
  %1701 = vmatmul.mubr.bf16.gmra.mxu0 %v1663
  %v1702 = vpop.f32.mrf.mxu0
  %v1703 = vadd.f32 0.0, %v1702
  %v1704 = vpop.f32.mrf.mxu0
  %v1705 = vpop.f32.mrf.mxu0
  %v1706 = vpop.f32.mrf.mxu0
  %1707 = vdwg.mxu0
  %v1708 = vpack.c.bf16 %v1703, %v1703
  %v1710 = vsel %vm150, %v1708, 0
  %1712 = vmatprep.subr.bf16.mxu0 0
  %1713 = vmatpush1.bf16.msra.mxu0 0
  %1714 = vmatprep.subr.bf16.mxu0 0
  %1715 = vmatpush1.bf16.msra.mxu0 0
  %1716 = vmatprep.subr.bf16.mxu0 0
  %1717 = vmatpush1.bf16.msra.mxu0 0
  %1718 = vmatprep.subr.bf16.mxu0 0
  %1719 = vmatpush1.bf16.msra.mxu0 0
  %1720 = vmatprep.subr.bf16.mxu0 0
  %1721 = vmatpush1.bf16.msra.mxu0 0
  %1722 = vmatprep.subr.bf16.mxu0 0
  %1723 = vmatpush1.bf16.msra.mxu0 0
  %1724 = vmatprep.subr.bf16.mxu0 0
  %1725 = vmatpush1.bf16.msra.mxu0 0
  %1726 = vmatprep.subr.bf16.mxu0 0
  %1727 = vmatpush1.bf16.msra.mxu0 %v1390
  %1728 = vmatprep.subr.bf16.mxu0 0
  %1729 = vmatpush2.bf16.msra.mxu0 0
  %1730 = vmatprep.subr.bf16.mxu0 0
  %1731 = vmatpush2.bf16.msra.mxu0 0
  %1732 = vmatprep.subr.bf16.mxu0 0
  %1733 = vmatpush2.bf16.msra.mxu0 0
  %1734 = vmatprep.subr.bf16.mxu0 0
  %1735 = vmatpush2.bf16.msra.mxu0 0
  %1736 = vmatprep.subr.bf16.mxu0 0
  %1737 = vmatpush2.bf16.msra.mxu0 0
  %1738 = vmatprep.subr.bf16.mxu0 0
  %1739 = vmatpush2.bf16.msra.mxu0 0
  %1740 = vmatprep.subr.bf16.mxu0 0
  %1741 = vmatpush2.bf16.msra.mxu0 0
  %1742 = vmatprep.subr.bf16.mxu0 0
  %1743 = vmatpush2.bf16.msra.mxu0 0
  %1744 = vmatprep.mubr.bf16.mxu0 0
  %1745 = vmatmul.mubr.bf16.gmra.mxu0 %v1710
  %v1746 = vpop.f32.mrf.mxu0
  %v1747 = vadd.f32 0.0, %v1746
  %v1748 = vpop.f32.mrf.mxu0
  %v1749 = vpop.f32.mrf.mxu0
  %v1750 = vpop.f32.mrf.mxu0
  %1751 = vdwg.mxu0
  %v1753 = vsel %vm150, %v1595, 0
  %1755 = vmatprep.subr.bf16.mxu0 0
  %1756 = vmatpush1.bf16.msra.mxu0 0
  %1757 = vmatprep.subr.bf16.mxu0 0
  %1758 = vmatpush1.bf16.msra.mxu0 0
  %1759 = vmatprep.subr.bf16.mxu0 0
  %1760 = vmatpush1.bf16.msra.mxu0 0
  %1761 = vmatprep.subr.bf16.mxu0 0
  %1762 = vmatpush1.bf16.msra.mxu0 0
  %1763 = vmatprep.subr.bf16.mxu0 0
  %1764 = vmatpush1.bf16.msra.mxu0 0
  %1765 = vmatprep.subr.bf16.mxu0 0
  %1766 = vmatpush1.bf16.msra.mxu0 0
  %1767 = vmatprep.subr.bf16.mxu0 0
  %1768 = vmatpush1.bf16.msra.mxu0 0
  %1769 = vmatprep.subr.bf16.mxu0 0
  %1770 = vmatpush1.bf16.msra.mxu0 %v1439
  %1771 = vmatprep.subr.bf16.mxu0 0
  %1772 = vmatpush2.bf16.msra.mxu0 0
  %1773 = vmatprep.subr.bf16.mxu0 0
  %1774 = vmatpush2.bf16.msra.mxu0 0
  %1775 = vmatprep.subr.bf16.mxu0 0
  %1776 = vmatpush2.bf16.msra.mxu0 0
  %1777 = vmatprep.subr.bf16.mxu0 0
  %1778 = vmatpush2.bf16.msra.mxu0 0
  %1779 = vmatprep.subr.bf16.mxu0 0
  %1780 = vmatpush2.bf16.msra.mxu0 0
  %1781 = vmatprep.subr.bf16.mxu0 0
  %1782 = vmatpush2.bf16.msra.mxu0 0
  %1783 = vmatprep.subr.bf16.mxu0 0
  %1784 = vmatpush2.bf16.msra.mxu0 0
  %1785 = vmatprep.subr.bf16.mxu0 0
  %1786 = vmatpush2.bf16.msra.mxu0 0
  %1787 = vmatprep.mubr.bf16.mxu0 0
  %1788 = vmatmul.mubr.bf16.gmra.mxu0 %v1753
  %v1789 = vpop.f32.mrf.mxu0
  %v1790 = vadd.f32 %v1747, %v1789
  %v1791 = vpop.f32.mrf.mxu0
  %v1792 = vpop.f32.mrf.mxu0
  %v1793 = vpop.f32.mrf.mxu0
  %1794 = vdwg.mxu0
  %s1795 = scalar_lea.vmem %s5, 1
  %v1796 = vld [vmem:[%s1795] sm:$0x1]
  %v1798 = vlaneseq
  %v1799 = vshrl.u32 %v1798, 7
  %v1800 = vsub.s32 0, %v1799
  %v1801 = vrot.slane %v1796, %v1800
  %v1803 = vadd.f32 %v1479, %v1801
  %v1804 = vadd.f32 %v1790, %v1801
  %v1805 = vadd.f32 %v1083, %v1803
  %v1806 = vadd.f32 %v1084, %v1804
  %s1807 = scalar_lea.vmem %s6, 1
  %v1808 = vld [vmem:[%s1807] sm:$0x1]
  %s1809 = scalar_lea.vmem %s7, 1
  %v1810 = vld [vmem:[%s1809] sm:$0x1]
  %v1811 = vsel %vm97, %v1805, 0.0
  %1812 = vadd.xlane.f32.xlu0 %v1811
  %v1813 = vpop.xlane.xlu0 %1812
  %v1814 = vsel %vm97, %v1806, 0.0
  %1815 = vadd.xlane.f32.xlu0 %v1814
  %v1816 = vpop.xlane.xlu0 %1815
  %v1817 = vmul.f32 %v1813, %v803
  %v1818 = vmul.f32 %v1816, %v803
  %v1819 = vsub.f32 %v1805, %v1817
  %v1820 = vsub.f32 %v1806, %v1818
  %v1821 = vmul.f32 %v1819, %v1819
  %v1822 = vmul.f32 %v1820, %v1820
  %v1823 = vsel %vm97, %v1821, 0.0
  %1824 = vadd.xlane.f32.xlu0 %v1823
  %v1825 = vpop.xlane.xlu0 %1824
  %v1826 = vsel %vm97, %v1822, 0.0
  %1827 = vadd.xlane.f32.xlu0 %v1826
  %v1828 = vpop.xlane.xlu0 %1827
  %v1829 = vmul.f32 %v1825, %v803
  %v1830 = vmul.f32 %v1828, %v803
  %v1831 = vadd.f32 %v1829, 1e-05
  %v1832 = vadd.f32 %v1830, 1e-05
  %v1833 = vrsqrt.pop %v1831
  %v1834 = vrsqrt.pop %v1832
  %v1835 = vmul.f32 %v1819, %v1833
  %v1836 = vmul.f32 %v1820, %v1834
  %v1838 = vlaneseq
  %v1839 = vshrl.u32 %v1838, 7
  %v1840 = vsub.s32 0, %v1839
  %v1841 = vrot.slane %v1808, %v1840
  %v1843 = vmul.f32 %v1835, %v1841
  %v1844 = vmul.f32 %v1836, %v1841
  %v1846 = vlaneseq
  %v1847 = vshrl.u32 %v1846, 7
  %v1848 = vsub.s32 0, %v1847
  %v1849 = vrot.slane %v1810, %v1848
  %v1851 = vadd.f32 %v1843, %v1849
  %v1852 = vadd.f32 %v1844, %v1849
  %v1853 = vpack.c.bf16 %v1852, %v1851
  %s1854 = scalar_lea.vmem %s8, 16
  %v1855 = vld [vmem:[%s1854] sm:$0xf]
  %v1856 = vld [vmem:[%s1854 + $0x4] sm:$0xf]
  %v1857 = vld [vmem:[%s1854 + $0x8] sm:$0xf]
  %v1858 = vld [vmem:[%s1854 + $0xc] sm:$0xf]
  %s1859 = scalar_lea.vmem %s9, 1
  %v1860 = vld [vmem:[%s1859] sm:$0x1]
  %v1862 = vlaneseq
  %v1863 = vshrl.u32 %v1862, 7
  %v1864 = vsub.s32 0, %v1863
  %v1865 = vrot.slane %v1860, %v1864
  %v1871 = vunpack.c.l.b16 %v1855
  %v1872 = vunpack.c.l.b16 %v1856
  %v1873 = vunpack.c.l.b16 %v1857
  %v1874 = vunpack.c.l.b16 %v1858
  %v1875 = vpack.c.b16 %v1872, %v1871
  %v1876 = vpack.c.b16 %v1874, %v1873
  %v1880 = vsel %vm97, %v1853, 0
  %1882 = vmatprep.subr.bf16.mxu0 0
  %1883 = vmatpush1.bf16.msra.mxu0 0
  %1884 = vmatprep.subr.bf16.mxu0 0
  %1885 = vmatpush1.bf16.msra.mxu0 0
  %1886 = vmatprep.subr.bf16.mxu0 0
  %1887 = vmatpush1.bf16.msra.mxu0 0
  %1888 = vmatprep.subr.bf16.mxu0 0
  %1889 = vmatpush1.bf16.msra.mxu0 0
  %1890 = vmatprep.subr.bf16.mxu0 0
  %1891 = vmatpush1.bf16.msra.mxu0 0
  %1892 = vmatprep.subr.bf16.mxu0 0
  %1893 = vmatpush1.bf16.msra.mxu0 0
  %1894 = vmatprep.subr.bf16.mxu0 0
  %1895 = vmatpush1.bf16.msra.mxu0 %v1876
  %1896 = vmatprep.subr.bf16.mxu0 0
  %1897 = vmatpush1.bf16.msra.mxu0 %v1875
  %1898 = vmatprep.subr.bf16.mxu0 0
  %1899 = vmatpush2.bf16.msra.mxu0 0
  %1900 = vmatprep.subr.bf16.mxu0 0
  %1901 = vmatpush2.bf16.msra.mxu0 0
  %1902 = vmatprep.subr.bf16.mxu0 0
  %1903 = vmatpush2.bf16.msra.mxu0 0
  %1904 = vmatprep.subr.bf16.mxu0 0
  %1905 = vmatpush2.bf16.msra.mxu0 0
  %1906 = vmatprep.subr.bf16.mxu0 0
  %1907 = vmatpush2.bf16.msra.mxu0 0
  %1908 = vmatprep.subr.bf16.mxu0 0
  %1909 = vmatpush2.bf16.msra.mxu0 0
  %1910 = vmatprep.subr.bf16.mxu0 0
  %1911 = vmatpush2.bf16.msra.mxu0 0
  %1912 = vmatprep.subr.bf16.mxu0 0
  %1913 = vmatpush2.bf16.msra.mxu0 0
  %1914 = vmatprep.mubr.bf16.mxu0 0
  %1915 = vmatmul.mubr.bf16.gmra.mxu0 %v1880
  %v1916 = vpop.f32.mrf.mxu0
  %v1917 = vadd.f32 %v1865, %v1916
  %v1918 = vpop.f32.mrf.mxu0
  %v1919 = vpop.f32.mrf.mxu0
  %v1920 = vadd.f32 %v1865, %v1919
  %v1921 = vpop.f32.mrf.mxu0
  %1922 = vdwg.mxu0
  %v1923 = vmul.f32 %v1917, 0.5
  %v1924 = vmul.f32 %v1920, 0.5
  %v1925 = vmul.f32 %v1917, 0.044715
  %v1926 = vmul.f32 %v1920, 0.044715
  %v1927 = vmul.f32 %v1925, %v1917
  %v1928 = vmul.f32 %v1926, %v1920
  %v1929 = vmul.f32 %v1927, %v1917
  %v1930 = vmul.f32 %v1928, %v1920
  %v1931 = vadd.f32 %v1917, %v1929
  %v1932 = vadd.f32 %v1920, %v1930
  %v1933 = vmul.f32 %v1931, 0.7978846
  %v1934 = vmul.f32 %v1932, 0.7978846
  %v1935 = vtanh.pop %v1933
  %v1936 = vtanh.pop %v1934
  %v1937 = vadd.f32 %v1935, 1.0
  %v1938 = vadd.f32 %v1936, 1.0
  %v1939 = vmul.f32 %v1923, %v1937
  %v1940 = vmul.f32 %v1924, %v1938
  %v1941 = vpack.c.bf16 %v1940, %v1939
  %s1942 = scalar_lea.vmem %s10, 64
  %v1943 = vld [vmem:[%s1942] sm:$0xf]
  %v1944 = vld [vmem:[%s1942 + $0x4] sm:$0xf]
  %v1945 = vld [vmem:[%s1942 + $0x8] sm:$0xf]
  %v1946 = vld [vmem:[%s1942 + $0xc] sm:$0xf]
  %v1947 = vld [vmem:[%s1942 + $0x10] sm:$0xf]
  %v1948 = vld [vmem:[%s1942 + $0x14] sm:$0xf]
  %v1949 = vld [vmem:[%s1942 + $0x18] sm:$0xf]
  %v1950 = vld [vmem:[%s1942 + $0x1c] sm:$0xf]
  %v1951 = vld [vmem:[%s1942 + $0x20] sm:$0xf]
  %v1952 = vld [vmem:[%s1942 + $0x24] sm:$0xf]
  %v1953 = vld [vmem:[%s1942 + $0x28] sm:$0xf]
  %v1954 = vld [vmem:[%s1942 + $0x2c] sm:$0xf]
  %v1955 = vld [vmem:[%s1942 + $0x30] sm:$0xf]
  %v1956 = vld [vmem:[%s1942 + $0x34] sm:$0xf]
  %v1957 = vld [vmem:[%s1942 + $0x38] sm:$0xf]
  %v1958 = vld [vmem:[%s1942 + $0x3c] sm:$0xf]
  %s1959 = scalar_lea.vmem %s11, 1
  %v1960 = vld [vmem:[%s1959] sm:$0x1]
  %v1962 = vlaneseq
  %v1963 = vshrl.u32 %v1962, 7
  %v1964 = vsub.s32 0, %v1963
  %v1965 = vrot.slane %v1960, %v1964
  %v1983 = vunpack.c.l.b16 %v1943
  %v1984 = vunpack.c.l.b16 %v1944
  %v1985 = vunpack.c.l.b16 %v1945
  %v1986 = vunpack.c.l.b16 %v1946
  %v1987 = vunpack.c.l.b16 %v1947
  %v1988 = vunpack.c.l.b16 %v1948
  %v1989 = vunpack.c.l.b16 %v1949
  %v1990 = vunpack.c.l.b16 %v1950
  %v1991 = vunpack.c.l.b16 %v1951
  %v1992 = vunpack.c.l.b16 %v1952
  %v1993 = vunpack.c.l.b16 %v1953
  %v1994 = vunpack.c.l.b16 %v1954
  %v1995 = vunpack.c.l.b16 %v1955
  %v1996 = vunpack.c.l.b16 %v1956
  %v1997 = vunpack.c.l.b16 %v1957
  %v1998 = vunpack.c.l.b16 %v1958
  %v1999 = vpack.c.b16 %v1984, %v1983
  %v2000 = vpack.c.b16 %v1986, %v1985
  %v2001 = vpack.c.b16 %v1988, %v1987
  %v2002 = vpack.c.b16 %v1990, %v1989
  %v2003 = vpack.c.b16 %v1992, %v1991
  %v2004 = vpack.c.b16 %v1994, %v1993
  %v2005 = vpack.c.b16 %v1996, %v1995
  %v2006 = vpack.c.b16 %v1998, %v1997
  %2015 = vmatprep.subr.bf16.mxu0 0
  %2016 = vmatpush1.bf16.msra.mxu0 %v2006
  %2017 = vmatprep.subr.bf16.mxu0 0
  %2018 = vmatpush1.bf16.msra.mxu0 %v2005
  %2019 = vmatprep.subr.bf16.mxu0 0
  %2020 = vmatpush1.bf16.msra.mxu0 %v2004
  %2021 = vmatprep.subr.bf16.mxu0 0
  %2022 = vmatpush1.bf16.msra.mxu0 %v2003
  %2023 = vmatprep.subr.bf16.mxu0 0
  %2024 = vmatpush1.bf16.msra.mxu0 %v2002
  %2025 = vmatprep.subr.bf16.mxu0 0
  %2026 = vmatpush1.bf16.msra.mxu0 %v2001
  %2027 = vmatprep.subr.bf16.mxu0 0
  %2028 = vmatpush1.bf16.msra.mxu0 %v2000
  %2029 = vmatprep.subr.bf16.mxu0 0
  %2030 = vmatpush1.bf16.msra.mxu0 %v1999
  %2031 = vmatprep.subr.bf16.mxu0 0
  %2032 = vmatpush2.bf16.msra.mxu0 0
  %2033 = vmatprep.subr.bf16.mxu0 0
  %2034 = vmatpush2.bf16.msra.mxu0 0
  %2035 = vmatprep.subr.bf16.mxu0 0
  %2036 = vmatpush2.bf16.msra.mxu0 0
  %2037 = vmatprep.subr.bf16.mxu0 0
  %2038 = vmatpush2.bf16.msra.mxu0 0
  %2039 = vmatprep.subr.bf16.mxu0 0
  %2040 = vmatpush2.bf16.msra.mxu0 0
  %2041 = vmatprep.subr.bf16.mxu0 0
  %2042 = vmatpush2.bf16.msra.mxu0 0
  %2043 = vmatprep.subr.bf16.mxu0 0
  %2044 = vmatpush2.bf16.msra.mxu0 0
  %2045 = vmatprep.subr.bf16.mxu0 0
  %2046 = vmatpush2.bf16.msra.mxu0 0
  %2047 = vmatprep.mubr.bf16.mxu0 0
  %2048 = vmatmul.mubr.bf16.gmra.mxu0 %v1941
  %v2049 = vpop.f32.mrf.mxu0
  %v2050 = vadd.f32 %v1965, %v2049
  %v2051 = vpop.f32.mrf.mxu0
  %v2052 = vpop.f32.mrf.mxu0
  %v2053 = vadd.f32 %v1965, %v2052
  %v2054 = vpop.f32.mrf.mxu0
  %2055 = vdwg.mxu0
  %v2056 = vadd.f32 %v1851, %v2050
  %v2057 = vadd.f32 %v1852, %v2053
  %s2058 = scalar_lea.vmem %s12, 1
  %v2059 = vld [vmem:[%s2058] sm:$0x1]
  %s2060 = scalar_lea.vmem %s13, 1
  %v2061 = vld [vmem:[%s2060] sm:$0x1]
  %v2062 = vsel %vm97, %v2056, 0.0
  %2063 = vadd.xlane.f32.xlu0 %v2062
  %v2064 = vpop.xlane.xlu0 %2063
  %v2065 = vsel %vm97, %v2057, 0.0
  %2066 = vadd.xlane.f32.xlu0 %v2065
  %v2067 = vpop.xlane.xlu0 %2066
  %v2068 = vmul.f32 %v2064, %v803
  %v2069 = vmul.f32 %v2067, %v803
  %v2070 = vsub.f32 %v2056, %v2068
  %v2071 = vsub.f32 %v2057, %v2069
  %v2072 = vmul.f32 %v2070, %v2070
  %v2073 = vmul.f32 %v2071, %v2071
  %v2074 = vsel %vm97, %v2072, 0.0
  %2075 = vadd.xlane.f32.xlu0 %v2074
  %v2076 = vpop.xlane.xlu0 %2075
  %v2077 = vsel %vm97, %v2073, 0.0
  %2078 = vadd.xlane.f32.xlu0 %v2077
  %v2079 = vpop.xlane.xlu0 %2078
  %v2080 = vmul.f32 %v2076, %v803
  %v2081 = vmul.f32 %v2079, %v803
  %v2082 = vadd.f32 %v2080, 1e-05
  %v2083 = vadd.f32 %v2081, 1e-05
  %v2084 = vrsqrt.pop %v2082
  %v2085 = vrsqrt.pop %v2083
  %v2086 = vmul.f32 %v2070, %v2084
  %v2087 = vmul.f32 %v2071, %v2085
  %v2089 = vlaneseq
  %v2090 = vshrl.u32 %v2089, 7
  %v2091 = vsub.s32 0, %v2090
  %v2092 = vrot.slane %v2059, %v2091
  %v2094 = vmul.f32 %v2086, %v2092
  %v2095 = vmul.f32 %v2087, %v2092
  %v2097 = vlaneseq
  %v2098 = vshrl.u32 %v2097, 7
  %v2099 = vsub.s32 0, %v2098
  %v2100 = vrot.slane %v2061, %v2099
  %v2102 = vadd.f32 %v2094, %v2100
  %v2103 = vadd.f32 %v2095, %v2100
  %v2104 = vpack.c.bf16 %v2103, %v2102
  %v2105 = vld [vmem:[%s14] sm:$0xf]
  %v2106 = vld [vmem:[%s14 + $0x4] sm:$0xf]
  %v2107 = vld [vmem:[%s14 + $0x8] sm:$0xf]
  %v2108 = vld [vmem:[%s14 + $0xc] sm:$0xf]
  %v2109 = vld [vmem:[%s15] sm:$0x1]
  %v2111 = vlaneseq
  %v2112 = vshrl.u32 %v2111, 7
  %v2113 = vsub.s32 0, %v2112
  %v2114 = vrot.slane %v2109, %v2113
  %v2120 = vunpack.c.l.b16 %v2105
  %v2121 = vunpack.c.l.b16 %v2106
  %v2122 = vunpack.c.l.b16 %v2107
  %v2123 = vunpack.c.l.b16 %v2108
  %v2124 = vpack.c.b16 %v2121, %v2120
  %v2125 = vpack.c.b16 %v2123, %v2122
  %v2129 = vsel %vm97, %v2104, 0
  %2131 = vmatprep.subr.bf16.mxu0 0
  %2132 = vmatpush1.bf16.msra.mxu0 0
  %2133 = vmatprep.subr.bf16.mxu0 0
  %2134 = vmatpush1.bf16.msra.mxu0 0
  %2135 = vmatprep.subr.bf16.mxu0 0
  %2136 = vmatpush1.bf16.msra.mxu0 0
  %2137 = vmatprep.subr.bf16.mxu0 0
  %2138 = vmatpush1.bf16.msra.mxu0 0
  %2139 = vmatprep.subr.bf16.mxu0 0
  %2140 = vmatpush1.bf16.msra.mxu0 0
  %2141 = vmatprep.subr.bf16.mxu0 0
  %2142 = vmatpush1.bf16.msra.mxu0 0
  %2143 = vmatprep.subr.bf16.mxu0 0
  %2144 = vmatpush1.bf16.msra.mxu0 %v2125
  %2145 = vmatprep.subr.bf16.mxu0 0
  %2146 = vmatpush1.bf16.msra.mxu0 %v2124
  %2147 = vmatprep.subr.bf16.mxu0 0
  %2148 = vmatpush2.bf16.msra.mxu0 0
  %2149 = vmatprep.subr.bf16.mxu0 0
  %2150 = vmatpush2.bf16.msra.mxu0 0
  %2151 = vmatprep.subr.bf16.mxu0 0
  %2152 = vmatpush2.bf16.msra.mxu0 0
  %2153 = vmatprep.subr.bf16.mxu0 0
  %2154 = vmatpush2.bf16.msra.mxu0 0
  %2155 = vmatprep.subr.bf16.mxu0 0
  %2156 = vmatpush2.bf16.msra.mxu0 0
  %2157 = vmatprep.subr.bf16.mxu0 0
  %2158 = vmatpush2.bf16.msra.mxu0 0
  %2159 = vmatprep.subr.bf16.mxu0 0
  %2160 = vmatpush2.bf16.msra.mxu0 0
  %2161 = vmatprep.subr.bf16.mxu0 0
  %2162 = vmatpush2.bf16.msra.mxu0 0
  %2163 = vmatprep.mubr.bf16.mxu0 0
  %2164 = vmatmul.mubr.bf16.gmra.mxu0 %v2129
  %v2165 = vpop.f32.mrf.mxu0
  %v2166 = vadd.f32 %v2114, %v2165
  %v2167 = vpop.f32.mrf.mxu0
  %v2168 = vpop.f32.mrf.mxu0
  %v2169 = vadd.f32 %v2114, %v2168
  %v2170 = vpop.f32.mrf.mxu0
  %2171 = vdwg.mxu0
  %v2172 = vtanh.pop %v2166
  %v2173 = vtanh.pop %v2169
  %v2174 = vpack.c.bf16 %v2173, %v2172
  %v2175 = vld [vmem:[%s16] sm:$0xf]
  %v2176 = vld [vmem:[%s16 + $0x4] sm:$0xf]
  %v2177 = vld [vmem:[%s16 + $0x8] sm:$0xf]
  %v2178 = vld [vmem:[%s16 + $0xc] sm:$0xf]
  %v2179 = vld [vmem:[%s17] sm:$0x1]
  %v2181 = vlaneseq
  %v2182 = vshrl.u32 %v2181, 7
  %v2183 = vsub.s32 0, %v2182
  %v2184 = vrot.slane %v2179, %v2183
  %v2190 = vunpack.c.l.b16 %v2175
  %v2191 = vunpack.c.l.b16 %v2176
  %v2192 = vunpack.c.l.b16 %v2177
  %v2193 = vunpack.c.l.b16 %v2178
  %v2194 = vpack.c.b16 %v2191, %v2190
  %v2195 = vpack.c.b16 %v2193, %v2192
  %v2199 = vsel %vm97, %v2174, 0
  %2201 = vmatprep.subr.bf16.mxu0 0
  %2202 = vmatpush1.bf16.msra.mxu0 0
  %2203 = vmatprep.subr.bf16.mxu0 0
  %2204 = vmatpush1.bf16.msra.mxu0 0
  %2205 = vmatprep.subr.bf16.mxu0 0
  %2206 = vmatpush1.bf16.msra.mxu0 0
  %2207 = vmatprep.subr.bf16.mxu0 0
  %2208 = vmatpush1.bf16.msra.mxu0 0
  %2209 = vmatprep.subr.bf16.mxu0 0
  %2210 = vmatpush1.bf16.msra.mxu0 0
  %2211 = vmatprep.subr.bf16.mxu0 0
  %2212 = vmatpush1.bf16.msra.mxu0 0
  %2213 = vmatprep.subr.bf16.mxu0 0
  %2214 = vmatpush1.bf16.msra.mxu0 %v2195
  %2215 = vmatprep.subr.bf16.mxu0 0
  %2216 = vmatpush1.bf16.msra.mxu0 %v2194
  %2217 = vmatprep.subr.bf16.mxu0 0
  %2218 = vmatpush2.bf16.msra.mxu0 0
  %2219 = vmatprep.subr.bf16.mxu0 0
  %2220 = vmatpush2.bf16.msra.mxu0 0
  %2221 = vmatprep.subr.bf16.mxu0 0
  %2222 = vmatpush2.bf16.msra.mxu0 0
  %2223 = vmatprep.subr.bf16.mxu0 0
  %2224 = vmatpush2.bf16.msra.mxu0 0
  %2225 = vmatprep.subr.bf16.mxu0 0
  %2226 = vmatpush2.bf16.msra.mxu0 0
  %2227 = vmatprep.subr.bf16.mxu0 0
  %2228 = vmatpush2.bf16.msra.mxu0 0
  %2229 = vmatprep.subr.bf16.mxu0 0
  %2230 = vmatpush2.bf16.msra.mxu0 0
  %2231 = vmatprep.subr.bf16.mxu0 0
  %2232 = vmatpush2.bf16.msra.mxu0 0
  %2233 = vmatprep.mubr.bf16.mxu0 0
  %2234 = vmatmul.mubr.bf16.gmra.mxu0 %v2199
  %v2235 = vpop.f32.mrf.mxu0
  %v2236 = vadd.f32 %v2184, %v2235
  %v2237 = vpop.f32.mrf.mxu0
  %v2238 = vpop.f32.mrf.mxu0
  %v2239 = vadd.f32 %v2184, %v2238
  %v2240 = vpop.f32.mrf.mxu0
  %2241 = vdwg.mxu0
  %2242 = vst [vmem:[%s18] sm:$0xff] %v2236
  %2243 = vst [vmem:[%s18 + $0x8] sm:$0xff] %v2239
  // Predicated region
  $region74: #{bias_classifier_forward.1} parent=0 // pred_check
    _
  $region75: #{bias_classifier_forward.1} parent=0 // pred_check_branch
    %2245 = sbr.rel (0) target = $region77
  $region76: #{bias_classifier_forward.1} parent=0 // pred_region
    _
  $region77: #{bias_classifier_forward.1} parent=0 // pred_fallthru
    _
  // Predicated region
  $region78: #{bias_classifier_forward.1} parent=0 // pred_check
    _
  $region79: #{bias_classifier_forward.1} parent=0 // pred_check_branch
    %2247 = sbr.rel (0) target = $region81
  $region80: #{bias_classifier_forward.1} parent=0 // pred_region
    _
  $region81: #{bias_classifier_forward.1} parent=0 // pred_fallthru
    _

</llo_original>
